<compile_context>
chip_gen: v7x
topology: tpu7x:2x2x1
jax: 0.10.0
libtpu: 0.0.40
codegen_flags: <defaults>
</compile_context>

<pallas_src>
import functools

import jax
import jax.numpy as jnp
from jax import lax
from jax.experimental import pallas as pl
from jax.experimental.pallas import tpu as pltpu

_VMEM_LIMIT = 32 * 1024 * 1024     # safe on v5e/v6e/v7x
TILE_M = 512                       # im2col rows per grid step (multiple of 8)
_TILE_BUDGET = 8 * 1024 * 1024     # VMEM budget for the double-buffered tiles


def _round_up(n, m):
    return ((n + m - 1) // m) * m


def _pick_tile_m(m, bytes_per_row):
    """Largest row-tile <= TILE_M whose double-buffered tiles fit the budget."""
    tm = min(TILE_M, _round_up(m, 8))
    cap = max(8, (_TILE_BUDGET // max(bytes_per_row, 1)) // 8 * 8)
    return max(8, min(tm, cap))


# ----------------------------------------------------------------------------
# Pallas kernels
# ----------------------------------------------------------------------------
def _resize_norm_kernel(x_ref, ah_ref, awt_ref, o_ref, *, normalize):
    """Separable bilinear resize of one image plane, fused with 2*x - 1."""
    img = x_ref[0]                                                   # [Hi, Wi]
    t = jnp.dot(ah_ref[...], img, preferred_element_type=jnp.float32)  # [Ho,Wi]
    r = jnp.dot(t, awt_ref[...], preferred_element_type=jnp.float32)   # [Ho,Wo]
    if normalize:
        r = 2.0 * r - 1.0
    o_ref[0] = r


def _matmul_bn_relu_kernel(p_ref, w_ref, s_ref, b_ref, o_ref):
    """im2col-patches @ weights on the MXU, BN scale/shift + ReLU epilogue."""
    acc = jnp.dot(p_ref[...], w_ref[...], preferred_element_type=jnp.float32)
    o_ref[...] = jnp.maximum(acc * s_ref[...] + b_ref[...], 0.0)


def _window_max_kernel(p_ref, o_ref):
    r = p_ref[0]
    for t in range(1, p_ref.shape[0]):
        r = jnp.maximum(r, p_ref[t])
    o_ref[...] = r


def _window_mean_kernel(p_ref, o_ref):
    r = p_ref[0]
    for t in range(1, p_ref.shape[0]):
        r = r + p_ref[t]
    o_ref[...] = r * (1.0 / p_ref.shape[0])


def _global_avg_kernel(x_ref, o_ref):
    o_ref[0] = jnp.mean(x_ref[0], axis=0, keepdims=True)


# ----------------------------------------------------------------------------
# Wrappers around the kernels
# ----------------------------------------------------------------------------
def _bilinear_matrix(out_size, in_size):
    """PyTorch bilinear (align_corners=False) interpolation matrix [out, in]."""
    o = jnp.arange(out_size, dtype=jnp.float32)
    src = (o + 0.5) * (in_size / out_size) - 0.5
    src = jnp.maximum(src, 0.0)
    i0f = jnp.floor(src)
    w1 = src - i0f
    i0 = jnp.minimum(i0f.astype(jnp.int32), in_size - 1)
    i1 = jnp.minimum(i0 + 1, in_size - 1)
    return (jax.nn.one_hot(i0, in_size, dtype=jnp.float32) * (1.0 - w1)[:, None]
            + jax.nn.one_hot(i1, in_size, dtype=jnp.float32) * w1[:, None])


def resize_bilinear_normalize(x_nchw, size, normalize):
    """NCHW -> bilinear resize -> optional 2x-1 -> NHWC (fused Pallas kernel)."""
    B, C, H, W = x_nchw.shape
    Ho, Wo = size
    ah = _bilinear_matrix(Ho, H)             # [Ho, H]
    awt = _bilinear_matrix(Wo, W).T          # [W, Wo]
    xf = x_nchw.reshape(B * C, H, W).astype(jnp.float32)
    out = pl.pallas_call(
        functools.partial(_resize_norm_kernel, normalize=normalize),
        out_shape=jax.ShapeDtypeStruct((B * C, Ho, Wo), jnp.float32),
        grid=(B * C,),
        in_specs=[pl.BlockSpec((1, H, W), lambda i: (i, 0, 0)),
                  pl.BlockSpec((Ho, H), lambda i: (0, 0)),
                  pl.BlockSpec((W, Wo), lambda i: (0, 0))],
        out_specs=pl.BlockSpec((1, Ho, Wo), lambda i: (i, 0, 0)),
        compiler_params=pltpu.CompilerParams(
            dimension_semantics=("parallel",), vmem_limit_bytes=_VMEM_LIMIT),
    )(xf, ah, awt)
    return jnp.transpose(out.reshape(B, C, Ho, Wo), (0, 2, 3, 1))   # NHWC


def _extract_patches(x, kh, kw, stride, ph, pw):
    """NHWC -> [B, Ho, Wo, kh*kw, C] window taps (XLA layout plumbing)."""
    if ph or pw:
        x = jnp.pad(x, ((0, 0), (ph, ph), (pw, pw), (0, 0)))
    B, H, W, C = x.shape
    Ho = (H - kh) // stride + 1
    Wo = (W - kw) // stride + 1
    cols = []
    for i in range(kh):
        for j in range(kw):
            cols.append(x[:, i:i + (Ho - 1) * stride + 1:stride,
                            j:j + (Wo - 1) * stride + 1:stride, :])
    return jnp.stack(cols, axis=3), Ho, Wo


def _matmul_bn_relu(pm, wmat, scale, shift):
    M, K = pm.shape
    N = wmat.shape[1]
    tm = _pick_tile_m(M, (K + N) * 4 * 2)
    Mp = _round_up(M, tm)
    if Mp != M:
        pm = jnp.pad(pm, ((0, Mp - M), (0, 0)))
    out = pl.pallas_call(
        _matmul_bn_relu_kernel,
        out_shape=jax.ShapeDtypeStruct((Mp, N), jnp.float32),
        grid=(Mp // tm,),
        in_specs=[pl.BlockSpec((tm, K), lambda i: (i, 0)),
                  pl.BlockSpec((K, N), lambda i: (0, 0)),
                  pl.BlockSpec((1, N), lambda i: (0, 0)),
                  pl.BlockSpec((1, N), lambda i: (0, 0))],
        out_specs=pl.BlockSpec((tm, N), lambda i: (i, 0)),
        compiler_params=pltpu.CompilerParams(
            dimension_semantics=("parallel",), vmem_limit_bytes=_VMEM_LIMIT),
    )(pm, wmat, scale, shift)
    return out[:M]


def conv_bn_relu(x, p):
    """BasicConv2d: conv(bias=False) + folded BN + ReLU, NHWC in/out."""
    B = x.shape[0]
    cin = x.shape[-1]
    patches, Ho, Wo = _extract_patches(x, p['kh'], p['kw'], p['stride'],
                                       p['pad'][0], p['pad'][1])
    K = p['kh'] * p['kw'] * cin
    pm = patches.reshape(B * Ho * Wo, K)
    out = _matmul_bn_relu(pm, p['wmat'], p['scale'], p['shift'])
    return out.reshape(B, Ho, Wo, p['wmat'].shape[1])


def _pool_2d(x, k, stride, pad, op):
    B, H, W, C = x.shape
    patches, Ho, Wo = _extract_patches(x, k, k, stride, pad, pad)
    M = B * Ho * Wo
    taps = k * k
    pmat = jnp.moveaxis(patches.reshape(M, taps, C), 1, 0)   # [taps, M, C]
    tm = _pick_tile_m(M, (taps * C + C) * 4 * 2)
    Mp = _round_up(M, tm)
    if Mp != M:
        pmat = jnp.pad(pmat, ((0, 0), (0, Mp - M), (0, 0)))
    kernel = _window_max_kernel if op == 'max' else _window_mean_kernel
    out = pl.pallas_call(
        kernel,
        out_shape=jax.ShapeDtypeStruct((Mp, C), jnp.float32),
        grid=(Mp // tm,),
        in_specs=[pl.BlockSpec((taps, tm, C), lambda i: (0, i, 0))],
        out_specs=pl.BlockSpec((tm, C), lambda i: (i, 0)),
        compiler_params=pltpu.CompilerParams(
            dimension_semantics=("parallel",), vmem_limit_bytes=_VMEM_LIMIT),
    )(pmat)
    return out[:M].reshape(B, Ho, Wo, C)


def max_pool_3x3_s2(x):
    return _pool_2d(x, 3, 2, 0, 'max')


def avg_pool_3x3_s1p1(x):
    # count_include_pad=True -> mean over all 9 (zero-padded) taps.
    return _pool_2d(x, 3, 1, 1, 'avg')


def adaptive_avg_pool_1x1(x):
    B, H, W, C = x.shape
    xf = x.reshape(B, H * W, C)
    out = pl.pallas_call(
        _global_avg_kernel,
        out_shape=jax.ShapeDtypeStruct((B, 1, C), jnp.float32),
        grid=(B,),
        in_specs=[pl.BlockSpec((1, H * W, C), lambda i: (i, 0, 0))],
        out_specs=pl.BlockSpec((1, 1, C), lambda i: (i, 0, 0)),
        compiler_params=pltpu.CompilerParams(
            dimension_semantics=("parallel",), vmem_limit_bytes=_VMEM_LIMIT),
    )(xf)
    return out.reshape(B, 1, 1, C)


# ----------------------------------------------------------------------------
# Parameters (random init, shapes identical to torchvision inception_v3)
# ----------------------------------------------------------------------------
def _basic_conv(key, cin, cout, kh, kw, stride=1, pad=(0, 0)):
    kw_, kb, km, kv, kg = jax.random.split(key, 5)
    fan_in = cin * kh * kw
    w = jax.random.normal(kw_, (kh, kw, cin, cout), jnp.float32) * (2.0 / fan_in) ** 0.5
    gamma = 1.0 + 0.1 * jax.random.normal(kg, (cout,), jnp.float32)
    beta = 0.1 * jax.random.normal(kb, (cout,), jnp.float32)
    mean = 0.1 * jax.random.normal(km, (cout,), jnp.float32)
    var = jnp.abs(1.0 + 0.1 * jax.random.normal(kv, (cout,), jnp.float32))
    scale = gamma * lax.rsqrt(var + 1e-3)        # BN eps = 0.001
    shift = beta - mean * scale
    return dict(w=w, wmat=w.reshape(kh * kw * cin, cout),
                scale=scale.reshape(1, cout), shift=shift.reshape(1, cout),
                kh=kh, kw=kw, stride=stride, pad=pad)


def _inception_a_params(keys, cin, pool_features):
    p = {'b1':   _basic_conv(next(keys), cin, 64, 1, 1),
         'b5_1': _basic_conv(next(keys), cin, 48, 1, 1),
         'b5_2': _basic_conv(next(keys), 48, 64, 5, 5, pad=(2, 2)),
         'b3_1': _basic_conv(next(keys), cin, 64, 1, 1),
         'b3_2': _basic_conv(next(keys), 64, 96, 3, 3, pad=(1, 1)),
         'b3_3': _basic_conv(next(keys), 96, 96, 3, 3, pad=(1, 1)),
         'bp':   _basic_conv(next(keys), cin, pool_features, 1, 1)}
    return p, 64 + 64 + 96 + pool_features


def _inception_b_params(keys, cin):
    p = {'b3':   _basic_conv(next(keys), cin, 384, 3, 3, stride=2),
         'db_1': _basic_conv(next(keys), cin, 64, 1, 1),
         'db_2': _basic_conv(next(keys), 64, 96, 3, 3, pad=(1, 1)),
         'db_3': _basic_conv(next(keys), 96, 96, 3, 3, stride=2)}
    return p, 384 + 96 + cin


def _inception_c_params(keys, cin, c7):
    p = {'b1':   _basic_conv(next(keys), cin, 192, 1, 1),
         'b7_1': _basic_conv(next(keys), cin, c7, 1, 1),
         'b7_2': _basic_conv(next(keys), c7, c7, 1, 7, pad=(0, 3)),
         'b7_3': _basic_conv(next(keys), c7, 192, 7, 1, pad=(3, 0)),
         'db_1': _basic_conv(next(keys), cin, c7, 1, 1),
         'db_2': _basic_conv(next(keys), c7, c7, 7, 1, pad=(3, 0)),
         'db_3': _basic_conv(next(keys), c7, c7, 1, 7, pad=(0, 3)),
         'db_4': _basic_conv(next(keys), c7, c7, 7, 1, pad=(3, 0)),
         'db_5': _basic_conv(next(keys), c7, 192, 1, 7, pad=(0, 3)),
         'bp':   _basic_conv(next(keys), cin, 192, 1, 1)}
    return p, 768


def _inception_d_params(keys, cin):
    p = {'b3_1': _basic_conv(next(keys), cin, 192, 1, 1),
         'b3_2': _basic_conv(next(keys), 192, 320, 3, 3, stride=2),
         'b7_1': _basic_conv(next(keys), cin, 192, 1, 1),
         'b7_2': _basic_conv(next(keys), 192, 192, 1, 7, pad=(0, 3)),
         'b7_3': _basic_conv(next(keys), 192, 192, 7, 1, pad=(3, 0)),
         'b7_4': _basic_conv(next(keys), 192, 192, 3, 3, stride=2)}
    return p, 320 + 192 + cin


def _inception_e_params(keys, cin):
    p = {'b1':    _basic_conv(next(keys), cin, 320, 1, 1),
         'b3_1':  _basic_conv(next(keys), cin, 384, 1, 1),
         'b3_2a': _basic_conv(next(keys), 384, 384, 1, 3, pad=(0, 1)),
         'b3_2b': _basic_conv(next(keys), 384, 384, 3, 1, pad=(1, 0)),
         'db_1':  _basic_conv(next(keys), cin, 448, 1, 1),
         'db_2':  _basic_conv(next(keys), 448, 384, 3, 3, pad=(1, 1)),
         'db_3a': _basic_conv(next(keys), 384, 384, 1, 3, pad=(0, 1)),
         'db_3b': _basic_conv(next(keys), 384, 384, 3, 1, pad=(1, 0)),
         'bp':    _basic_conv(next(keys), cin, 192, 1, 1)}
    return p, 320 + 768 + 768 + 192


def _inception_a(x, p):
    b1 = conv_bn_relu(x, p['b1'])
    b5 = conv_bn_relu(conv_bn_relu(x, p['b5_1']), p['b5_2'])
    b3 = conv_bn_relu(conv_bn_relu(conv_bn_relu(x, p['b3_1']), p['b3_2']), p['b3_3'])
    bp = conv_bn_relu(avg_pool_3x3_s1p1(x), p['bp'])
    return jnp.concatenate([b1, b5, b3, bp], axis=-1)


def _inception_b(x, p):
    b3 = conv_bn_relu(x, p['b3'])
    db = conv_bn_relu(conv_bn_relu(conv_bn_relu(x, p['db_1']), p['db_2']), p['db_3'])
    bp = max_pool_3x3_s2(x)
    return jnp.concatenate([b3, db, bp], axis=-1)


def _inception_c(x, p):
    b1 = conv_bn_relu(x, p['b1'])
    b7 = x
    for k in ('b7_1', 'b7_2', 'b7_3'):
        b7 = conv_bn_relu(b7, p[k])
    db = x
    for k in ('db_1', 'db_2', 'db_3', 'db_4', 'db_5'):
        db = conv_bn_relu(db, p[k])
    bp = conv_bn_relu(avg_pool_3x3_s1p1(x), p['bp'])
    return jnp.concatenate([b1, b7, db, bp], axis=-1)


def _inception_d(x, p):
    b3 = conv_bn_relu(conv_bn_relu(x, p['b3_1']), p['b3_2'])
    b7 = x
    for k in ('b7_1', 'b7_2', 'b7_3', 'b7_4'):
        b7 = conv_bn_relu(b7, p[k])
    bp = max_pool_3x3_s2(x)
    return jnp.concatenate([b3, b7, bp], axis=-1)


def _inception_e(x, p):
    b1 = conv_bn_relu(x, p['b1'])
    y = conv_bn_relu(x, p['b3_1'])
    b3 = jnp.concatenate([conv_bn_relu(y, p['b3_2a']),
                          conv_bn_relu(y, p['b3_2b'])], axis=-1)
    z = conv_bn_relu(conv_bn_relu(x, p['db_1']), p['db_2'])
    db = jnp.concatenate([conv_bn_relu(z, p['db_3a']),
                          conv_bn_relu(z, p['db_3b'])], axis=-1)
    bp = conv_bn_relu(avg_pool_3x3_s1p1(x), p['bp'])
    return jnp.concatenate([b1, b3, db, bp], axis=-1)


# ----------------------------------------------------------------------------
# InceptionFID
# ----------------------------------------------------------------------------
class InceptionFID:
    DEFAULT_BLOCK_INDEX = 3
    BLOCK_INDEX_BY_DIM = {64: 0, 192: 1, 768: 2, 2048: 3}

    def __init__(self, key, output_blocks=(DEFAULT_BLOCK_INDEX,),
                 resize_input=True, normalize_input=True):
        self.resize_input = resize_input
        self.normalize_input = normalize_input
        self.output_blocks = sorted(output_blocks)
        self.last_needed_block = max(self.output_blocks)
        assert self.last_needed_block <= 3, 'Last possible output block index is 3'
        keys = iter(jax.random.split(key, 200))
        # block 0
        self.b0 = [_basic_conv(next(keys), 3, 32, 3, 3, stride=2),
                   _basic_conv(next(keys), 32, 32, 3, 3),
                   _basic_conv(next(keys), 32, 64, 3, 3, pad=(1, 1))]
        if self.last_needed_block >= 1:
            self.b1 = [_basic_conv(next(keys), 64, 80, 1, 1),
                       _basic_conv(next(keys), 80, 192, 3, 3)]
        if self.last_needed_block >= 2:
            c = 192
            self.m5b, c = _inception_a_params(keys, c, 32)
            self.m5c, c = _inception_a_params(keys, c, 64)
            self.m5d, c = _inception_a_params(keys, c, 64)
            self.m6a, c = _inception_b_params(keys, c)
            self.m6b, c = _inception_c_params(keys, c, 128)
            self.m6c, c = _inception_c_params(keys, c, 160)
            self.m6d, c = _inception_c_params(keys, c, 160)
            self.m6e, c = _inception_c_params(keys, c, 192)
        if self.last_needed_block >= 3:
            self.m7a, c = _inception_d_params(keys, c)
            self.m7b, c = _inception_e_params(keys, c)
            self.m7c, c = _inception_e_params(keys, c)

    def _block0(self, x):
        for p in self.b0:
            x = conv_bn_relu(x, p)
        return max_pool_3x3_s2(x)

    def _block1(self, x):
        for p in self.b1:
            x = conv_bn_relu(x, p)
        return max_pool_3x3_s2(x)

    def _block2(self, x):
        x = _inception_a(x, self.m5b)
        x = _inception_a(x, self.m5c)
        x = _inception_a(x, self.m5d)
        x = _inception_b(x, self.m6a)
        x = _inception_c(x, self.m6b)
        x = _inception_c(x, self.m6c)
        x = _inception_c(x, self.m6d)
        x = _inception_c(x, self.m6e)
        return x

    def _block3(self, x):
        x = _inception_d(x, self.m7a)
        x = _inception_e(x, self.m7b)
        x = _inception_e(x, self.m7c)
        return adaptive_avg_pool_1x1(x)

    def __call__(self, inp):
        """inp: [B, 3, H, W] in (0, 1); returns NCHW feature maps."""
        outp = []
        x = inp.astype(jnp.float32)
        if self.resize_input:
            x = resize_bilinear_normalize(x, (299, 299), self.normalize_input)
        else:
            x = jnp.transpose(x, (0, 2, 3, 1))
            if self.normalize_input:
                x = 2.0 * x - 1.0
        blocks = [self._block0, self._block1, self._block2, self._block3]
        for idx in range(self.last_needed_block + 1):
            x = blocks[idx](x)
            if idx in self.output_blocks:
                outp.append(jnp.transpose(x, (0, 3, 1, 2)))   # NCHW, like torch
            if idx == self.last_needed_block:
                break
        return outp


# ----------------------------------------------------------------------------
# Pure-JAX reference (blocks 0-1) for the self-test
# ----------------------------------------------------------------------------
def _reference_blocks01(model, x_nchw):
    ah = _bilinear_matrix(299, x_nchw.shape[2])
    aw = _bilinear_matrix(299, x_nchw.shape[3])
    r = jnp.einsum('oh,bchw,pw->bcop', ah, x_nchw.astype(jnp.float32), aw)
    x = jnp.transpose(2.0 * r - 1.0, (0, 2, 3, 1))            # NHWC

    def ref_conv(x, p):
        y = lax.conv_general_dilated(
            x, p['w'], (p['stride'], p['stride']),
            [(p['pad'][0], p['pad'][0]), (p['pad'][1], p['pad'][1])],
            dimension_numbers=('NHWC', 'HWIO', 'NHWC'))
        return jnp.maximum(y * p['scale'].reshape(1, 1, 1, -1)
                           + p['shift'].reshape(1, 1, 1, -1), 0.0)

    def ref_maxpool(x):
        return lax.reduce_window(x, -jnp.inf, lax.max,
                                 (1, 3, 3, 1), (1, 2, 2, 1), 'VALID')

    outs = []
    for p in model.b0:
        x = ref_conv(x, p)
    x = ref_maxpool(x)
    outs.append(jnp.transpose(x, (0, 3, 1, 2)))
    for p in model.b1:
        x = ref_conv(x, p)
    x = ref_maxpool(x)
    outs.append(jnp.transpose(x, (0, 3, 1, 2)))
    return outs


if __name__ == "__main__":
    key = jax.random.PRNGKey(0)
    k_param, k_x = jax.random.split(key)
    # Small input per the spec: B x 3 x H x W with values in (0, 1).
    x = jax.random.uniform(k_x, (2, 3, 16, 16), jnp.float32)

    # The self-test exercises the resize/normalize kernel plus blocks 0 and 1
    # end-to-end (5 fused conv+BN+ReLU matmul kernels + 2 maxpool kernels).
    # Blocks 2-3 (Mixed_5b..Mixed_7c, global avg-pool) are implemented above
    # from the same kernels and selectable via output_blocks=[3], but are kept
    # out of the self-test to bound compile time.
    model = InceptionFID(k_param, output_blocks=[0, 1])
    feats = model(x)
    feats = jax.block_until_ready(feats)

    assert len(feats) == 2
    assert feats[0].shape == (2, 64, 73, 73), feats[0].shape
    assert feats[1].shape == (2, 192, 35, 35), feats[1].shape

    refs = _reference_blocks01(model, x)
    for got, ref in zip(feats, refs):
        # Both paths use default (bf16-pass) MXU precision, so compare with a
        # normalized max-error tolerance; structural bugs give O(1) errors.
        err = float(jnp.max(jnp.abs(got - ref)) / (jnp.max(jnp.abs(ref)) + 1e-6))
        assert err < 8e-2, err

    print("KERNEL_OK")
</pallas_src>

<mosaic_0001>
module attributes {stable_mosaic.version = 11 : i64} {
  func.func @_resize_norm_kernel(%arg0: i32, %arg1: memref<1x16x16xf32, #tpu.memory_space<vmem>>, %arg2: memref<299x16xf32, #tpu.memory_space<vmem>>, %arg3: memref<16x299xf32, #tpu.memory_space<vmem>>, %arg4: memref<1x299x299xf32, #tpu.memory_space<vmem>>) attributes {dimension_semantics = [#tpu.dimension_semantics<parallel>], iteration_bounds = array<i64: 6>, scalar_prefetch = 0 : i64, scratch_operands = 0 : i64, tpu.core_type = #tpu.core_type<tc>, window_params = [{transform_indices = @transform_0, window_bounds = array<i64: 1, 16, 16>}, {pipeline_mode = #tpu.pipeline_mode<synchronous>, transform_indices = @transform_1, window_bounds = array<i64: 299, 16>}, {pipeline_mode = #tpu.pipeline_mode<synchronous>, transform_indices = @transform_2, window_bounds = array<i64: 16, 299>}, {transform_indices = @transform_3, window_bounds = array<i64: 1, 299, 299>}]} {
    %c0 = arith.constant 0 : index
    %c0_0 = arith.constant 0 : index
    %c0_1 = arith.constant 0 : index
    %0 = vector.load %arg1[%c0, %c0_0, %c0_1] : memref<1x16x16xf32, #tpu.memory_space<vmem>>, vector<1x16x16xf32>
    %1 = vector.shape_cast %0 : vector<1x16x16xf32> to vector<16x16xf32>
    %c0_2 = arith.constant 0 : index
    %c0_3 = arith.constant 0 : index
    %2 = vector.load %arg2[%c0_2, %c0_3] : memref<299x16xf32, #tpu.memory_space<vmem>>, vector<299x16xf32>
    %cst = arith.constant dense<0.000000e+00> : vector<299x16xf32>
    %3 = tpu.matmul %2, %1, %cst {dimension_numbers = #tpu.dot_dimension_numbers<[1], [0], [0], [1], [0, 0, 1, 1], [], []>} : vector<299x16xf32>, vector<16x16xf32>, vector<299x16xf32> -> vector<299x16xf32>
    %c0_4 = arith.constant 0 : index
    %c0_5 = arith.constant 0 : index
    %4 = vector.load %arg3[%c0_4, %c0_5] : memref<16x299xf32, #tpu.memory_space<vmem>>, vector<16x299xf32>
    %cst_6 = arith.constant dense<0.000000e+00> : vector<299x299xf32>
    %5 = tpu.matmul %3, %4, %cst_6 {dimension_numbers = #tpu.dot_dimension_numbers<[1], [0], [0], [1], [0, 0, 1, 1], [], []>} : vector<299x16xf32>, vector<16x299xf32>, vector<299x299xf32> -> vector<299x299xf32>
    %cst_7 = arith.constant 2.000000e+00 : f32
    %6 = vector.broadcast %cst_7 : f32 to vector<299x299xf32>
    %7 = arith.mulf %6, %5 : vector<299x299xf32>
    %cst_8 = arith.constant 1.000000e+00 : f32
    %8 = vector.broadcast %cst_8 : f32 to vector<299x299xf32>
    %9 = arith.subf %7, %8 : vector<299x299xf32>
    %c0_9 = arith.constant 0 : index
    %c0_10 = arith.constant 0 : index
    %c0_11 = arith.constant 0 : index
    %10 = vector.load %arg4[%c0_9, %c0_10, %c0_11] : memref<1x299x299xf32, #tpu.memory_space<vmem>>, vector<1x299x299xf32>
    %11 = vector.shape_cast %10 : vector<1x299x299xf32> to vector<299x299xf32>
    %12 = vector.shape_cast %9 : vector<299x299xf32> to vector<1x299x299xf32>
    tpu.vector_store %arg4[%c0_9, %c0_10, %c0_11], %12 {strides = array<i32>} : memref<1x299x299xf32, #tpu.memory_space<vmem>>, vector<1x299x299xf32>,
    return
  }
  func.func @transform_0(%arg0: i32) -> (i32, i32, i32) {
    %c0_i32 = arith.constant 0 : i32
    %c0_i32_0 = arith.constant 0 : i32
    %c0_i32_1 = arith.constant 0 : i32
    return %arg0, %c0_i32, %c0_i32_0 : i32, i32, i32
  }
  func.func @transform_1(%arg0: i32) -> (i32, i32) {
    %c0_i32 = arith.constant 0 : i32
    %c0_i32_0 = arith.constant 0 : i32
    %c0_i32_1 = arith.constant 0 : i32
    return %c0_i32, %c0_i32_0 : i32, i32
  }
  func.func @transform_2(%arg0: i32) -> (i32, i32) {
    %c0_i32 = arith.constant 0 : i32
    %c0_i32_0 = arith.constant 0 : i32
    %c0_i32_1 = arith.constant 0 : i32
    return %c0_i32, %c0_i32_0 : i32, i32
  }
  func.func @transform_3(%arg0: i32) -> (i32, i32, i32) {
    %c0_i32 = arith.constant 0 : i32
    %c0_i32_0 = arith.constant 0 : i32
    %c0_i32_1 = arith.constant 0 : i32
    return %arg0, %c0_i32, %c0_i32_0 : i32, i32, i32
  }
}

</mosaic_0001>

<llo_original>
// kernel: tpu_custom_call.1
$region0: #{tpu_custom_call.1}
  #allocation0 [shape = 'u32[]', space=smem, size = 0x4, offset = 0x4, fixed_abs, tag = 'smem constant byte address 0x4 - core index']
  #allocation1 [shape = 'u32[144,128]{1,0:T(1,128)}', space=vmem, size = 0x12000, scoped, tag = 'internal scratch']
  %s0 = inlined_call_operand.hbm [shape: f32[6,16,16], index: 0, kind: input, shape index: {}]
  %s1 = inlined_call_operand.vmem [shape: f32[299,16], index: 1, kind: input, shape index: {}]
  %s2 = inlined_call_operand.hbm [shape: f32[16,299], index: 2, kind: input, shape index: {}]
  %s3 = inlined_call_operand.hbm [shape: f32[6,299,299], index: 3, kind: output, shape index: {}]
  %s4 = sld [smem:[#allocation0]]
  $region53: #{tpu_custom_call.1} parent=0
    _
  %s6 = ssub.s32 1, %s4
  %s7 = scalar_select 0, %s6, %s4
  $region1: #{tpu_custom_call.1} parent=0
    #allocation2 [shape = 'u8[16384]{0}', space=vmem, size = 0x4000, scoped, tag = 'input window, operand 0']
    #allocation3 [shape = 's32[2]{0}', space=sflag, size = 0x8, scoped, tag = 'scoped memory for tpu_custom_call.1']
    #allocation4 [shape = 's32[2]{0}', space=sflag, size = 0x8, scoped, tag = 'scoped memory for tpu_custom_call.1']
    #allocation5 [shape = 'u8[24576]{0}', space=vmem, size = 0x6000, scoped, tag = 'input window, operand 2, single buffered']
    #allocation6 [shape = 's32[1]{0}', space=sflag, size = 0x4, scoped, tag = 'scoped memory for tpu_custom_call.1']
    #allocation7 [shape = 'u8[933888]{0}', space=vmem, size = 0xe4000, scoped, tag = 'output window, operand 0']
    %8 = vsyncpa [#allocation3], 0
    %s9 = scalar_lea.sflag [#allocation3], 1
    %10 = vsyncpa %s9, 0
    %11 = vsyncpa [#allocation6], 0
    %12 = vsyncpa [#allocation4], 0
    %s13 = scalar_lea.sflag [#allocation4], 1
    %14 = vsyncpa %s13, 0
    loop: start=0, step=1, limit=8
    $region2: #{tpu_custom_call.1} parent=1 // loop_pre_header
      _
    $region3: #{tpu_custom_call.1} parent=1 // loop_header
      %s16 = sphi 0, %s20
      %p17 = scmp.ge.s32.totalorder %s16, 8
      %s26 = sphi 0, %s28
      %s29 = sphi 0, %s26
      %s30 = sphi 0, %s29
      %s46 = sphi 0, %s30
      %s50 = sphi 0, %s50
      %s52 = sphi 0, %s50
      %s53 = sphi 0, %s52
      %s67 = sphi 0, %s53
      %s71 = sphi 0, %s71
      %s73 = sphi 0, %s71
      %s74 = sphi 0, %s73
      %s88 = sphi 0, %s74
      %s94 = sphi 0, %s96
      %s97 = sphi 0, %s94
      %s98 = sphi 0, %s97
      %s114 = sphi 0, %s98
    $region4: #{tpu_custom_call.1} parent=1 // loop_header_branch
      %19 = sbr.rel (%p17) target = $region8
    $region5: #{tpu_custom_call.1} parent=1 // loop_body
      %s21 = ssub.s32 %s16, 1
      %s22 = ssub.s32 %s16, 2
      %s23 = sadd.s32 %s16, 1
      %s24 = ssub.s32 %s16, %s23
      %p25 = scmp.eq.s32.totalorder %s24, 0
      %s27 = sadd.s32 %s26, 1
      %s28 = scalar_select %p25, %s26, %s27
      %p31 = pneg %p25
      %p32 = scmp.eq.s32.totalorder %s16, 5
      %p33 = por %p31, %p32
      %p34 = scmp.ne.s32.totalorder %s26, %s29
      %p35 = scmp.eq.s32.totalorder %s16, 0
      %p36 = por %p34, %p35
      %p37 = scmp.ne.s32.totalorder %s26, %s29
      %p38 = scmp.eq.s32.totalorder %s21, 5
      %p39 = por %p37, %p38
      %p40 = scmp.ne.s32.totalorder %s29, %s30
      %p41 = scmp.eq.s32.totalorder %s21, 0
      %p42 = por %p40, %p41
      %p43 = scmp.ne.s32.totalorder %s29, %s30
      %p44 = scmp.eq.s32.totalorder %s22, 5
      %p45 = por %p43, %p44
      %p47 = scmp.ne.s32.totalorder %s30, %s46
      %p48 = scmp.eq.s32.totalorder %s22, 0
      %p49 = por %p47, %p48
      %s51 = sadd.s32 %s50, 1
      %p54 = scmp.eq.s32.totalorder %s16, 5
      %p55 = scmp.ne.s32.totalorder %s50, %s52
      %p56 = scmp.eq.s32.totalorder %s16, 0
      %p57 = por %p55, %p56
      %p58 = scmp.ne.s32.totalorder %s50, %s52
      %p59 = scmp.eq.s32.totalorder %s21, 5
      %p60 = por %p58, %p59
      %p61 = scmp.ne.s32.totalorder %s52, %s53
      %p62 = scmp.eq.s32.totalorder %s21, 0
      %p63 = por %p61, %p62
      %p64 = scmp.ne.s32.totalorder %s52, %s53
      %p65 = scmp.eq.s32.totalorder %s22, 5
      %p66 = por %p64, %p65
      %p68 = scmp.ne.s32.totalorder %s53, %s67
      %p69 = scmp.eq.s32.totalorder %s22, 0
      %p70 = por %p68, %p69
      %s72 = sadd.s32 %s71, 1
      %p75 = scmp.eq.s32.totalorder %s16, 5
      %p76 = scmp.ne.s32.totalorder %s71, %s73
      %p77 = scmp.eq.s32.totalorder %s16, 0
      %p78 = por %p76, %p77
      %p79 = scmp.ne.s32.totalorder %s71, %s73
      %p80 = scmp.eq.s32.totalorder %s21, 5
      %p81 = por %p79, %p80
      %p82 = scmp.ne.s32.totalorder %s73, %s74
      %p83 = scmp.eq.s32.totalorder %s21, 0
      %p84 = por %p82, %p83
      %p85 = scmp.ne.s32.totalorder %s73, %s74
      %p86 = scmp.eq.s32.totalorder %s22, 5
      %p87 = por %p85, %p86
      %p89 = scmp.ne.s32.totalorder %s74, %s88
      %p90 = scmp.eq.s32.totalorder %s22, 0
      %p91 = por %p89, %p90
      %s92 = ssub.s32 %s16, %s23
      %p93 = scmp.eq.s32.totalorder %s92, 0
      %s95 = sadd.s32 %s94, 1
      %s96 = scalar_select %p93, %s94, %s95
      %p99 = pneg %p93
      %p100 = scmp.eq.s32.totalorder %s16, 5
      %p101 = por %p99, %p100
      %p102 = scmp.ne.s32.totalorder %s94, %s97
      %p103 = scmp.eq.s32.totalorder %s16, 0
      %p104 = por %p102, %p103
      %p105 = scmp.ne.s32.totalorder %s94, %s97
      %p106 = scmp.eq.s32.totalorder %s21, 5
      %p107 = por %p105, %p106
      %p108 = scmp.ne.s32.totalorder %s97, %s98
      %p109 = scmp.eq.s32.totalorder %s21, 0
      %p110 = por %p108, %p109
      %p111 = scmp.ne.s32.totalorder %s97, %s98
      %p112 = scmp.eq.s32.totalorder %s22, 5
      %p113 = por %p111, %p112
      %p115 = scmp.ne.s32.totalorder %s98, %s114
      %p116 = scmp.eq.s32.totalorder %s22, 0
      %p117 = por %p115, %p116
      %p118 = scmp.le.s32.totalorder 1, %s16
      %p119 = scmp.lt.s32.totalorder %s16, 7
      %p120 = pnand %p118, %p119
      %p121 = pneg %p120
      // Predicated region
      $region9: #{tpu_custom_call.1} parent=5 // pred_check
        _
      $region10: #{tpu_custom_call.1} parent=5 // pred_check_branch
        %123 = sbr.rel (%p120) target = $region12
      $region11: #{tpu_custom_call.1} parent=5 // pred_region
        %s124 = ssub.s32 %s16, 1
        // Predicated region
        $region13: #{tpu_custom_call.1} parent=11 // pred_check
          %p125 = pneg %p63
        $region14: #{tpu_custom_call.1} parent=11 // pred_check_branch
          %127 = sbr.rel (%p125) target = $region16
        $region15: #{tpu_custom_call.1} parent=11 // pred_region
          _
        $region16: #{tpu_custom_call.1} parent=11 // pred_fallthru
          _
        // Predicated region
        $region17: #{tpu_custom_call.1} parent=11 // pred_check
          %p128 = pneg %p84
        $region18: #{tpu_custom_call.1} parent=11 // pred_check_branch
          %130 = sbr.rel (%p128) target = $region20
        $region19: #{tpu_custom_call.1} parent=11 // pred_region
          %s132 = ssub.s32 768, 768
          %133 = vsyncadd [#allocation6], %s132
          %s134 = sshll.u32 [#allocation5], 4
          %s135 = int_to_ptr.vmem [resolvable:$true] %s134
          %140 = dma.hbm_to_vmem [thread:$0]  %s2, 768, %s135, [#allocation6], 384, 384, 24
        $region20: #{tpu_custom_call.1} parent=11 // pred_fallthru
          _
      $region12: #{tpu_custom_call.1} parent=5 // pred_fallthru
        _
      %p141 = scmp.lt.s32.totalorder %s16, 6
      // Predicated region
      $region21: #{tpu_custom_call.1} parent=5 // pred_check
        %p142 = pneg %p141
      $region22: #{tpu_custom_call.1} parent=5 // pred_check_branch
        %144 = sbr.rel (%p142) target = $region24
      $region23: #{tpu_custom_call.1} parent=5 // pred_region
        // Predicated region
        $region25: #{tpu_custom_call.1} parent=23 // pred_check
          %p145 = pneg %p36
        $region26: #{tpu_custom_call.1} parent=23 // pred_check_branch
          %147 = sbr.rel (%p145) target = $region28
        $region27: #{tpu_custom_call.1} parent=23 // pred_region
          %s148 = sand.u32 %s26, 1
          %s149 = scalar_lea.sflag [#allocation3], %s148
          %s150 = sand.u32 %s26, 1
          %s151 = smul.addr %s150, 16
          %s152 = scalar_lea.vmem [#allocation2], %s151
          %s154 = ssub.s32 256, 256
          %155 = vsyncadd %s149, %s154
          %s156 = smul.addr %s16, 2
          %s157 = smul.addr %s156, 128
          %s158 = scalar_lea.hbm %s0, %s157
          %s159 = sshll.u32 %s152, 4
          %s160 = int_to_ptr.vmem [resolvable:$true] %s159
          %165 = dma.hbm_to_vmem [thread:$0]  %s158, 256, %s160, %s149, 128, 128, 8
        $region28: #{tpu_custom_call.1} parent=23 // pred_fallthru
          _
      $region24: #{tpu_custom_call.1} parent=5 // pred_fallthru
        _
      %p166 = scmp.le.s32.totalorder 1, %s16
      %p167 = scmp.lt.s32.totalorder %s16, 7
      %p168 = pnand %p166, %p167
      %p169 = pneg %p168
      // Predicated region
      $region29: #{tpu_custom_call.1} parent=5 // pred_check
        _
      $region30: #{tpu_custom_call.1} parent=5 // pred_check_branch
        %171 = sbr.rel (%p168) target = $region32
      $region31: #{tpu_custom_call.1} parent=5 // pred_region
        %s172 = ssub.s32 %s16, 1
        %s173 = sand.u32 %s29, 1
        %s174 = scalar_lea.sflag [#allocation3], %s173
        %s175 = sand.u32 %s29, 1
        %s176 = smul.addr %s175, 16
        %s177 = scalar_lea.vmem [#allocation2], %s176
        // Predicated region
        $region33: #{tpu_custom_call.1} parent=31 // pred_check
          %p178 = pneg %p42
        $region34: #{tpu_custom_call.1} parent=31 // pred_check_branch
          %180 = sbr.rel (%p178) target = $region36
        $region35: #{tpu_custom_call.1} parent=31 // pred_region
          %181 = dma.done %s174, 256
        $region36: #{tpu_custom_call.1} parent=31 // pred_fallthru
          _
        // Predicated region
        $region37: #{tpu_custom_call.1} parent=31 // pred_check
          %p182 = pneg %p84
        $region38: #{tpu_custom_call.1} parent=31 // pred_check_branch
          %184 = sbr.rel (%p182) target = $region40
        $region39: #{tpu_custom_call.1} parent=31 // pred_region
          %185 = dma.done [#allocation6], 768
        $region40: #{tpu_custom_call.1} parent=31 // pred_fallthru
          _
        %s186 = sand.u32 %s29, 1
        %s187 = scalar_lea.sflag [#allocation3], %s186
        %s188 = sand.u32 %s29, 1
        %s189 = smul.addr %s188, 16
        %s190 = scalar_lea.vmem [#allocation2], %s189
        %p191 = pneg %p42
        %p192 = pneg %p39
        %p193 = pneg %p63
        %p194 = pneg %p60
        %p195 = pneg %p84
        %p196 = pneg %p81
        %p197 = pneg %p110
        %p198 = pneg %p107
        %s199 = sand.u32 %s97, 1
        %s200 = scalar_lea.sflag [#allocation4], %s199
        %s201 = sand.u32 %s97, 1
        %s202 = smul.addr %s201, 912
        %s203 = scalar_lea.vmem [#allocation7], %s202
        %v204 = vld [vmem:[%s177] sm:$0xff]
        %v205 = vld [vmem:[%s177 + $0x8] sm:$0xff]
        %v206 = vld [vmem:[%s1] sm:$0xff]
        %v207 = vld [vmem:[%s1 + $0x8] sm:$0xff]
        %v208 = vld [vmem:[%s1 + $0x10] sm:$0xff]
        %v209 = vld [vmem:[%s1 + $0x18] sm:$0xff]
        %v210 = vld [vmem:[%s1 + $0x20] sm:$0xff]
        %v211 = vld [vmem:[%s1 + $0x28] sm:$0xff]
        %v212 = vld [vmem:[%s1 + $0x30] sm:$0xff]
        %v213 = vld [vmem:[%s1 + $0x38] sm:$0xff]
        %v214 = vld [vmem:[%s1 + $0x40] sm:$0xff]
        %v215 = vld [vmem:[%s1 + $0x48] sm:$0xff]
        %v216 = vld [vmem:[%s1 + $0x50] sm:$0xff]
        %v217 = vld [vmem:[%s1 + $0x58] sm:$0xff]
        %v218 = vld [vmem:[%s1 + $0x60] sm:$0xff]
        %v219 = vld [vmem:[%s1 + $0x68] sm:$0xff]
        %v220 = vld [vmem:[%s1 + $0x70] sm:$0xff]
        %v221 = vld [vmem:[%s1 + $0x78] sm:$0xff]
        %v222 = vld [vmem:[%s1 + $0x80] sm:$0xff]
        %v223 = vld [vmem:[%s1 + $0x88] sm:$0xff]
        %v224 = vld [vmem:[%s1 + $0x90] sm:$0xff]
        %v225 = vld [vmem:[%s1 + $0x98] sm:$0xff]
        %v226 = vld [vmem:[%s1 + $0xa0] sm:$0xff]
        %v227 = vld [vmem:[%s1 + $0xa8] sm:$0xff]
        %v228 = vld [vmem:[%s1 + $0xb0] sm:$0xff]
        %v229 = vld [vmem:[%s1 + $0xb8] sm:$0xff]
        %v230 = vld [vmem:[%s1 + $0xc0] sm:$0xff]
        %v231 = vld [vmem:[%s1 + $0xc8] sm:$0xff]
        %v232 = vld [vmem:[%s1 + $0xd0] sm:$0xff]
        %v233 = vld [vmem:[%s1 + $0xd8] sm:$0xff]
        %v234 = vld [vmem:[%s1 + $0xe0] sm:$0xff]
        %v235 = vld [vmem:[%s1 + $0xe8] sm:$0xff]
        %v236 = vld [vmem:[%s1 + $0xf0] sm:$0xff]
        %v237 = vld [vmem:[%s1 + $0xf8] sm:$0xff]
        %v238 = vld [vmem:[%s1 + $0x100] sm:$0xff]
        %v239 = vld [vmem:[%s1 + $0x108] sm:$0xff]
        %v240 = vld [vmem:[%s1 + $0x110] sm:$0xff]
        %v241 = vld [vmem:[%s1 + $0x118] sm:$0xff]
        %v242 = vld [vmem:[%s1 + $0x120] sm:$0xff]
        %v243 = vld [vmem:[%s1 + $0x128] sm:$0x7]
        %vm244 = vcmask 130048
        %v246 = vsel %vm244, %v206, 0
        %v249 = vsel %vm244, %v207, 0
        %v252 = vsel %vm244, %v208, 0
        %v255 = vsel %vm244, %v209, 0
        %v258 = vsel %vm244, %v210, 0
        %v261 = vsel %vm244, %v211, 0
        %v264 = vsel %vm244, %v212, 0
        %v267 = vsel %vm244, %v213, 0
        %v270 = vsel %vm244, %v214, 0
        %v273 = vsel %vm244, %v215, 0
        %v276 = vsel %vm244, %v216, 0
        %v279 = vsel %vm244, %v217, 0
        %v282 = vsel %vm244, %v218, 0
        %v285 = vsel %vm244, %v219, 0
        %v288 = vsel %vm244, %v220, 0
        %v291 = vsel %vm244, %v221, 0
        %v294 = vsel %vm244, %v222, 0
        %v297 = vsel %vm244, %v223, 0
        %v300 = vsel %vm244, %v224, 0
        %v303 = vsel %vm244, %v225, 0
        %v306 = vsel %vm244, %v226, 0
        %v309 = vsel %vm244, %v227, 0
        %v312 = vsel %vm244, %v228, 0
        %v315 = vsel %vm244, %v229, 0
        %v318 = vsel %vm244, %v230, 0
        %v321 = vsel %vm244, %v231, 0
        %v324 = vsel %vm244, %v232, 0
        %v327 = vsel %vm244, %v233, 0
        %v330 = vsel %vm244, %v234, 0
        %v333 = vsel %vm244, %v235, 0
        %v336 = vsel %vm244, %v236, 0
        %v339 = vsel %vm244, %v237, 0
        %v342 = vsel %vm244, %v238, 0
        %v345 = vsel %vm244, %v239, 0
        %v348 = vsel %vm244, %v240, 0
        %v351 = vsel %vm244, %v241, 0
        %v354 = vsel %vm244, %v242, 0
        %v357 = vsel %vm244, %v243, 0
        %359 = vmatprep.subr.mxu0 0.0
        %360 = vmatpush1.msra.mxu0 %v204
        %361 = vmatprep.subr.mxu0 0.0
        %362 = vmatpush1.msra.mxu0 %v205
        %363 = vmatprep.subr.mxu0 0.0
        %364 = vmatpush1.msra.mxu0 0.0
        %365 = vmatprep.subr.mxu0 0.0
        %366 = vmatpush1.msra.mxu0 0.0
        %367 = vmatprep.subr.mxu0 0.0
        %368 = vmatpush1.msra.mxu0 0.0
        %369 = vmatprep.subr.mxu0 0.0
        %370 = vmatpush1.msra.mxu0 0.0
        %371 = vmatprep.subr.mxu0 0.0
        %372 = vmatpush1.msra.mxu0 0.0
        %373 = vmatprep.subr.mxu0 0.0
        %374 = vmatpush1.msra.mxu0 0.0
        %375 = vmatprep.subr.mxu0 0.0
        %376 = vmatpush1.msra.mxu0 0.0
        %377 = vmatprep.subr.mxu0 0.0
        %378 = vmatpush1.msra.mxu0 0.0
        %379 = vmatprep.subr.mxu0 0.0
        %380 = vmatpush1.msra.mxu0 0.0
        %381 = vmatprep.subr.mxu0 0.0
        %382 = vmatpush1.msra.mxu0 0.0
        %383 = vmatprep.subr.mxu0 0.0
        %384 = vmatpush1.msra.mxu0 0.0
        %385 = vmatprep.subr.mxu0 0.0
        %386 = vmatpush1.msra.mxu0 0.0
        %387 = vmatprep.subr.mxu0 0.0
        %388 = vmatpush1.msra.mxu0 0.0
        %389 = vmatprep.subr.mxu0 0.0
        %390 = vmatpush1.msra.mxu0 0.0
        %391 = vmatprep.subr.mxu0 0.0
        %392 = vmatpush1.msra.mxu0 0.0
        %393 = vmatprep.subr.mxu0 0.0
        %394 = vmatpush1.msra.mxu0 0.0
        %395 = vmatprep.subr.mxu0 0.0
        %396 = vmatpush1.msra.mxu0 0.0
        %397 = vmatprep.subr.mxu0 0.0
        %398 = vmatpush1.msra.mxu0 0.0
        %399 = vmatprep.subr.mxu0 0.0
        %400 = vmatpush1.msra.mxu0 0.0
        %401 = vmatprep.subr.mxu0 0.0
        %402 = vmatpush1.msra.mxu0 0.0
        %403 = vmatprep.subr.mxu0 0.0
        %404 = vmatpush1.msra.mxu0 0.0
        %405 = vmatprep.subr.mxu0 0.0
        %406 = vmatpush1.msra.mxu0 0.0
        %407 = vmatprep.subr.mxu0 0.0
        %408 = vmatpush1.msra.mxu0 0.0
        %409 = vmatprep.subr.mxu0 0.0
        %410 = vmatpush1.msra.mxu0 0.0
        %411 = vmatprep.subr.mxu0 0.0
        %412 = vmatpush1.msra.mxu0 0.0
        %413 = vmatprep.subr.mxu0 0.0
        %414 = vmatpush1.msra.mxu0 0.0
        %415 = vmatprep.subr.mxu0 0.0
        %416 = vmatpush1.msra.mxu0 0.0
        %417 = vmatprep.subr.mxu0 0.0
        %418 = vmatpush1.msra.mxu0 0.0
        %419 = vmatprep.subr.mxu0 0.0
        %420 = vmatpush1.msra.mxu0 0.0
        %421 = vmatprep.subr.mxu0 0.0
        %422 = vmatpush1.msra.mxu0 0.0
        %423 = vmatprep.mubr.f32.mxu0 0.0
        %424 = vmatmul.mubr.f32.gmra.mrb[0].mxu0 %v246
        %v425 = vpop.f32.mrb[0].mxu0
        %v426 = vadd.f32 0.0, %v425
        %v427 = vpop.f32.mrb[0].mxu0
        %428 = vmatprep.mubr.f32.mxu0 0.0
        %429 = vmatmul.mubr.f32.gmra.mrb[0].mxu0 %v249
        %v430 = vpop.f32.mrb[0].mxu0
        %v431 = vadd.f32 0.0, %v430
        %v432 = vpop.f32.mrb[0].mxu0
        %433 = vmatprep.mubr.f32.mxu0 0.0
        %434 = vmatmul.mubr.f32.gmra.mrb[0].mxu0 %v252
        %v435 = vpop.f32.mrb[0].mxu0
        %v436 = vadd.f32 0.0, %v435
        %v437 = vpop.f32.mrb[0].mxu0
        %438 = vmatprep.mubr.f32.mxu0 0.0
        %439 = vmatmul.mubr.f32.gmra.mrb[0].mxu0 %v255
        %v440 = vpop.f32.mrb[0].mxu0
        %v441 = vadd.f32 0.0, %v440
        %v442 = vpop.f32.mrb[0].mxu0
        %443 = vmatprep.mubr.f32.mxu0 0.0
        %444 = vmatmul.mubr.f32.gmra.mrb[0].mxu0 %v258
        %v445 = vpop.f32.mrb[0].mxu0
        %v446 = vadd.f32 0.0, %v445
        %v447 = vpop.f32.mrb[0].mxu0
        %448 = vmatprep.mubr.f32.mxu0 0.0
        %449 = vmatmul.mubr.f32.gmra.mrb[0].mxu0 %v261
        %v450 = vpop.f32.mrb[0].mxu0
        %v451 = vadd.f32 0.0, %v450
        %v452 = vpop.f32.mrb[0].mxu0
        %453 = vmatprep.mubr.f32.mxu0 0.0
        %454 = vmatmul.mubr.f32.gmra.mrb[0].mxu0 %v264
        %v455 = vpop.f32.mrb[0].mxu0
        %v456 = vadd.f32 0.0, %v455
        %v457 = vpop.f32.mrb[0].mxu0
        %458 = vmatprep.mubr.f32.mxu0 0.0
        %459 = vmatmul.mubr.f32.gmra.mrb[0].mxu0 %v267
        %v460 = vpop.f32.mrb[0].mxu0
        %v461 = vadd.f32 0.0, %v460
        %v462 = vpop.f32.mrb[0].mxu0
        %463 = vmatprep.mubr.f32.mxu0 0.0
        %464 = vmatmul.mubr.f32.gmra.mrb[0].mxu0 %v270
        %v465 = vpop.f32.mrb[0].mxu0
        %v466 = vadd.f32 0.0, %v465
        %v467 = vpop.f32.mrb[0].mxu0
        %468 = vmatprep.mubr.f32.mxu0 0.0
        %469 = vmatmul.mubr.f32.gmra.mrb[0].mxu0 %v273
        %v470 = vpop.f32.mrb[0].mxu0
        %v471 = vadd.f32 0.0, %v470
        %v472 = vpop.f32.mrb[0].mxu0
        %473 = vmatprep.mubr.f32.mxu0 0.0
        %474 = vmatmul.mubr.f32.gmra.mrb[0].mxu0 %v276
        %v475 = vpop.f32.mrb[0].mxu0
        %v476 = vadd.f32 0.0, %v475
        %v477 = vpop.f32.mrb[0].mxu0
        %478 = vmatprep.mubr.f32.mxu0 0.0
        %479 = vmatmul.mubr.f32.gmra.mrb[0].mxu0 %v279
        %v480 = vpop.f32.mrb[0].mxu0
        %v481 = vadd.f32 0.0, %v480
        %v482 = vpop.f32.mrb[0].mxu0
        %483 = vmatprep.mubr.f32.mxu0 0.0
        %484 = vmatmul.mubr.f32.gmra.mrb[0].mxu0 %v282
        %v485 = vpop.f32.mrb[0].mxu0
        %v486 = vadd.f32 0.0, %v485
        %v487 = vpop.f32.mrb[0].mxu0
        %488 = vmatprep.mubr.f32.mxu0 0.0
        %489 = vmatmul.mubr.f32.gmra.mrb[0].mxu0 %v285
        %v490 = vpop.f32.mrb[0].mxu0
        %v491 = vadd.f32 0.0, %v490
        %v492 = vpop.f32.mrb[0].mxu0
        %493 = vmatprep.mubr.f32.mxu0 0.0
        %494 = vmatmul.mubr.f32.gmra.mrb[0].mxu0 %v288
        %v495 = vpop.f32.mrb[0].mxu0
        %v496 = vadd.f32 0.0, %v495
        %v497 = vpop.f32.mrb[0].mxu0
        %498 = vmatprep.mubr.f32.mxu0 0.0
        %499 = vmatmul.mubr.f32.gmra.mrb[0].mxu0 %v291
        %v500 = vpop.f32.mrb[0].mxu0
        %v501 = vadd.f32 0.0, %v500
        %v502 = vpop.f32.mrb[0].mxu0
        %503 = vmatprep.mubr.f32.mxu0 0.0
        %504 = vmatmul.mubr.f32.gmra.mrb[0].mxu0 %v294
        %v505 = vpop.f32.mrb[0].mxu0
        %v506 = vadd.f32 0.0, %v505
        %v507 = vpop.f32.mrb[0].mxu0
        %508 = vmatprep.mubr.f32.mxu0 0.0
        %509 = vmatmul.mubr.f32.gmra.mrb[0].mxu0 %v297
        %v510 = vpop.f32.mrb[0].mxu0
        %v511 = vadd.f32 0.0, %v510
        %v512 = vpop.f32.mrb[0].mxu0
        %513 = vmatprep.mubr.f32.mxu0 0.0
        %514 = vmatmul.mubr.f32.gmra.mrb[0].mxu0 %v300
        %v515 = vpop.f32.mrb[0].mxu0
        %v516 = vadd.f32 0.0, %v515
        %v517 = vpop.f32.mrb[0].mxu0
        %518 = vmatprep.mubr.f32.mxu0 0.0
        %519 = vmatmul.mubr.f32.gmra.mrb[0].mxu0 %v303
        %v520 = vpop.f32.mrb[0].mxu0
        %v521 = vadd.f32 0.0, %v520
        %v522 = vpop.f32.mrb[0].mxu0
        %523 = vmatprep.mubr.f32.mxu0 0.0
        %524 = vmatmul.mubr.f32.gmra.mrb[0].mxu0 %v306
        %v525 = vpop.f32.mrb[0].mxu0
        %v526 = vadd.f32 0.0, %v525
        %v527 = vpop.f32.mrb[0].mxu0
        %528 = vmatprep.mubr.f32.mxu0 0.0
        %529 = vmatmul.mubr.f32.gmra.mrb[0].mxu0 %v309
        %v530 = vpop.f32.mrb[0].mxu0
        %v531 = vadd.f32 0.0, %v530
        %v532 = vpop.f32.mrb[0].mxu0
        %533 = vmatprep.mubr.f32.mxu0 0.0
        %534 = vmatmul.mubr.f32.gmra.mrb[0].mxu0 %v312
        %v535 = vpop.f32.mrb[0].mxu0
        %v536 = vadd.f32 0.0, %v535
        %v537 = vpop.f32.mrb[0].mxu0
        %538 = vmatprep.mubr.f32.mxu0 0.0
        %539 = vmatmul.mubr.f32.gmra.mrb[0].mxu0 %v315
        %v540 = vpop.f32.mrb[0].mxu0
        %v541 = vadd.f32 0.0, %v540
        %v542 = vpop.f32.mrb[0].mxu0
        %543 = vmatprep.mubr.f32.mxu0 0.0
        %544 = vmatmul.mubr.f32.gmra.mrb[0].mxu0 %v318
        %v545 = vpop.f32.mrb[0].mxu0
        %v546 = vadd.f32 0.0, %v545
        %v547 = vpop.f32.mrb[0].mxu0
        %548 = vmatprep.mubr.f32.mxu0 0.0
        %549 = vmatmul.mubr.f32.gmra.mrb[0].mxu0 %v321
        %v550 = vpop.f32.mrb[0].mxu0
        %v551 = vadd.f32 0.0, %v550
        %v552 = vpop.f32.mrb[0].mxu0
        %553 = vmatprep.mubr.f32.mxu0 0.0
        %554 = vmatmul.mubr.f32.gmra.mrb[0].mxu0 %v324
        %v555 = vpop.f32.mrb[0].mxu0
        %v556 = vadd.f32 0.0, %v555
        %v557 = vpop.f32.mrb[0].mxu0
        %558 = vmatprep.mubr.f32.mxu0 0.0
        %559 = vmatmul.mubr.f32.gmra.mrb[0].mxu0 %v327
        %v560 = vpop.f32.mrb[0].mxu0
        %v561 = vadd.f32 0.0, %v560
        %v562 = vpop.f32.mrb[0].mxu0
        %563 = vmatprep.mubr.f32.mxu0 0.0
        %564 = vmatmul.mubr.f32.gmra.mrb[0].mxu0 %v330
        %v565 = vpop.f32.mrb[0].mxu0
        %v566 = vadd.f32 0.0, %v565
        %v567 = vpop.f32.mrb[0].mxu0
        %568 = vmatprep.mubr.f32.mxu0 0.0
        %569 = vmatmul.mubr.f32.gmra.mrb[0].mxu0 %v333
        %v570 = vpop.f32.mrb[0].mxu0
        %v571 = vadd.f32 0.0, %v570
        %v572 = vpop.f32.mrb[0].mxu0
        %573 = vmatprep.mubr.f32.mxu0 0.0
        %574 = vmatmul.mubr.f32.gmra.mrb[0].mxu0 %v336
        %v575 = vpop.f32.mrb[0].mxu0
        %v576 = vadd.f32 0.0, %v575
        %v577 = vpop.f32.mrb[0].mxu0
        %578 = vmatprep.mubr.f32.mxu0 0.0
        %579 = vmatmul.mubr.f32.gmra.mrb[0].mxu0 %v339
        %v580 = vpop.f32.mrb[0].mxu0
        %v581 = vadd.f32 0.0, %v580
        %v582 = vpop.f32.mrb[0].mxu0
        %583 = vmatprep.mubr.f32.mxu0 0.0
        %584 = vmatmul.mubr.f32.gmra.mrb[0].mxu0 %v342
        %v585 = vpop.f32.mrb[0].mxu0
        %v586 = vadd.f32 0.0, %v585
        %v587 = vpop.f32.mrb[0].mxu0
        %588 = vmatprep.mubr.f32.mxu0 0.0
        %589 = vmatmul.mubr.f32.gmra.mrb[0].mxu0 %v345
        %v590 = vpop.f32.mrb[0].mxu0
        %v591 = vadd.f32 0.0, %v590
        %v592 = vpop.f32.mrb[0].mxu0
        %593 = vmatprep.mubr.f32.mxu0 0.0
        %594 = vmatmul.mubr.f32.gmra.mrb[0].mxu0 %v348
        %v595 = vpop.f32.mrb[0].mxu0
        %v596 = vadd.f32 0.0, %v595
        %v597 = vpop.f32.mrb[0].mxu0
        %598 = vmatprep.mubr.f32.mxu0 0.0
        %599 = vmatmul.mubr.f32.gmra.mrb[0].mxu0 %v351
        %v600 = vpop.f32.mrb[0].mxu0
        %v601 = vadd.f32 0.0, %v600
        %v602 = vpop.f32.mrb[0].mxu0
        %603 = vmatprep.mubr.f32.mxu0 0.0
        %604 = vmatmul.mubr.f32.gmra.mrb[0].mxu0 %v354
        %v605 = vpop.f32.mrb[0].mxu0
        %v606 = vadd.f32 0.0, %v605
        %v607 = vpop.f32.mrb[0].mxu0
        %608 = vmatprep.mubr.f32.mxu0 0.0
        %609 = vmatmul.mubr.f32.gmra.mrb[0].mxu0 %v357
        %v610 = vpop.f32.mrb[0].mxu0
        %v611 = vadd.f32 0.0, %v610
        %v612 = vpop.f32.mrb[0].mxu0
        %613 = vdwg.mxu0
        %v614 = vld [vmem:[#allocation5] sm:$0xff]
        %v615 = vld [vmem:[#allocation5 + $0x8] sm:$0xff]
        %v616 = vld [vmem:[#allocation5 + $0x10] sm:$0xff]
        %v617 = vld [vmem:[#allocation5 + $0x18] sm:$0xff]
        %v618 = vld [vmem:[#allocation5 + $0x20] sm:$0xff]
        %v619 = vld [vmem:[#allocation5 + $0x28] sm:$0xff]
        %v621 = vsel %vm244, %v426, 0
        %v624 = vsel %vm244, %v431, 0
        %v627 = vsel %vm244, %v436, 0
        %v630 = vsel %vm244, %v441, 0
        %v633 = vsel %vm244, %v446, 0
        %v636 = vsel %vm244, %v451, 0
        %v639 = vsel %vm244, %v456, 0
        %v642 = vsel %vm244, %v461, 0
        %v645 = vsel %vm244, %v466, 0
        %v648 = vsel %vm244, %v471, 0
        %v651 = vsel %vm244, %v476, 0
        %v654 = vsel %vm244, %v481, 0
        %v657 = vsel %vm244, %v486, 0
        %v660 = vsel %vm244, %v491, 0
        %v663 = vsel %vm244, %v496, 0
        %v666 = vsel %vm244, %v501, 0
        %v669 = vsel %vm244, %v506, 0
        %v672 = vsel %vm244, %v511, 0
        %v675 = vsel %vm244, %v516, 0
        %v678 = vsel %vm244, %v521, 0
        %v681 = vsel %vm244, %v526, 0
        %v684 = vsel %vm244, %v531, 0
        %v687 = vsel %vm244, %v536, 0
        %v690 = vsel %vm244, %v541, 0
        %v693 = vsel %vm244, %v546, 0
        %v696 = vsel %vm244, %v551, 0
        %v699 = vsel %vm244, %v556, 0
        %v702 = vsel %vm244, %v561, 0
        %v705 = vsel %vm244, %v566, 0
        %v708 = vsel %vm244, %v571, 0
        %v711 = vsel %vm244, %v576, 0
        %v714 = vsel %vm244, %v581, 0
        %v717 = vsel %vm244, %v586, 0
        %v720 = vsel %vm244, %v591, 0
        %v723 = vsel %vm244, %v596, 0
        %v726 = vsel %vm244, %v601, 0
        %v729 = vsel %vm244, %v606, 0
        %v732 = vsel %vm244, %v611, 0
        %734 = vmatprep.subr.mxu0 %v615
        %735 = vmatpush1.msra.mxu0 %v614
        %736 = vmatprep.subr.mxu0 %v618
        %737 = vmatpush1.msra.mxu0 %v617
        %738 = vmatprep.subr.mxu0 0.0
        %739 = vmatpush1.msra.mxu0 0.0
        %740 = vmatprep.subr.mxu0 0.0
        %741 = vmatpush1.msra.mxu0 0.0
        %742 = vmatprep.subr.mxu0 0.0
        %743 = vmatpush1.msra.mxu0 0.0
        %744 = vmatprep.subr.mxu0 0.0
        %745 = vmatpush1.msra.mxu0 0.0
        %746 = vmatprep.subr.mxu0 0.0
        %747 = vmatpush1.msra.mxu0 0.0
        %748 = vmatprep.subr.mxu0 0.0
        %749 = vmatpush1.msra.mxu0 0.0
        %750 = vmatprep.subr.mxu0 0.0
        %751 = vmatpush1.msra.mxu0 0.0
        %752 = vmatprep.subr.mxu0 0.0
        %753 = vmatpush1.msra.mxu0 0.0
        %754 = vmatprep.subr.mxu0 0.0
        %755 = vmatpush1.msra.mxu0 0.0
        %756 = vmatprep.subr.mxu0 0.0
        %757 = vmatpush1.msra.mxu0 0.0
        %758 = vmatprep.subr.mxu0 0.0
        %759 = vmatpush1.msra.mxu0 0.0
        %760 = vmatprep.subr.mxu0 0.0
        %761 = vmatpush1.msra.mxu0 0.0
        %762 = vmatprep.subr.mxu0 0.0
        %763 = vmatpush1.msra.mxu0 0.0
        %764 = vmatprep.subr.mxu0 0.0
        %765 = vmatpush1.msra.mxu0 0.0
        %766 = vmatprep.subr.mxu0 0.0
        %767 = vmatpush1.msra.mxu0 0.0
        %768 = vmatprep.subr.mxu0 0.0
        %769 = vmatpush1.msra.mxu0 0.0
        %770 = vmatprep.subr.mxu0 0.0
        %771 = vmatpush1.msra.mxu0 0.0
        %772 = vmatprep.subr.mxu0 0.0
        %773 = vmatpush1.msra.mxu0 0.0
        %774 = vmatprep.subr.mxu0 0.0
        %775 = vmatpush1.msra.mxu0 0.0
        %776 = vmatprep.subr.mxu0 0.0
        %777 = vmatpush1.msra.mxu0 0.0
        %778 = vmatprep.subr.mxu0 0.0
        %779 = vmatpush1.msra.mxu0 0.0
        %780 = vmatprep.subr.mxu0 0.0
        %781 = vmatpush1.msra.mxu0 0.0
        %782 = vmatprep.subr.mxu0 0.0
        %783 = vmatpush1.msra.mxu0 0.0
        %784 = vmatprep.subr.mxu0 0.0
        %785 = vmatpush1.msra.mxu0 0.0
        %786 = vmatprep.subr.mxu0 0.0
        %787 = vmatpush1.msra.mxu0 0.0
        %788 = vmatprep.subr.mxu0 0.0
        %789 = vmatpush1.msra.mxu0 0.0
        %790 = vmatprep.subr.mxu0 0.0
        %791 = vmatpush1.msra.mxu0 0.0
        %792 = vmatprep.subr.mxu0 0.0
        %793 = vmatpush1.msra.mxu0 0.0
        %794 = vmatprep.subr.mxu0 0.0
        %795 = vmatpush1.msra.mxu0 0.0
        %796 = vmatprep.subr.mxu0 0.0
        %797 = vmatpush1.msra.mxu0 0.0
        %798 = vmatprep.mubr.f32.mxu0 0.0
        %799 = vmatmul.mubr.f32.gmra.mrb[0].mxu0 %v621
        %v800 = vpop.f32.mrb[0].mxu0
        %v801 = vadd.f32 0.0, %v800
        %v802 = vpop.f32.mrb[0].mxu0
        %v803 = vadd.f32 0.0, %v802
        %804 = vmatprep.mubr.f32.mxu0 0.0
        %805 = vmatmul.mubr.f32.gmra.mrb[0].mxu0 %v624
        %v806 = vpop.f32.mrb[0].mxu0
        %v807 = vadd.f32 0.0, %v806
        %v808 = vpop.f32.mrb[0].mxu0
        %v809 = vadd.f32 0.0, %v808
        %810 = vmatprep.mubr.f32.mxu0 0.0
        %811 = vmatmul.mubr.f32.gmra.mrb[0].mxu0 %v627
        %v812 = vpop.f32.mrb[0].mxu0
        %v813 = vadd.f32 0.0, %v812
        %v814 = vpop.f32.mrb[0].mxu0
        %v815 = vadd.f32 0.0, %v814
        %816 = vmatprep.mubr.f32.mxu0 0.0
        %817 = vmatmul.mubr.f32.gmra.mrb[0].mxu0 %v630
        %v818 = vpop.f32.mrb[0].mxu0
        %v819 = vadd.f32 0.0, %v818
        %v820 = vpop.f32.mrb[0].mxu0
        %v821 = vadd.f32 0.0, %v820
        %822 = vmatprep.mubr.f32.mxu0 0.0
        %823 = vmatmul.mubr.f32.gmra.mrb[0].mxu0 %v633
        %v824 = vpop.f32.mrb[0].mxu0
        %v825 = vadd.f32 0.0, %v824
        %v826 = vpop.f32.mrb[0].mxu0
        %v827 = vadd.f32 0.0, %v826
        %828 = vmatprep.mubr.f32.mxu0 0.0
        %829 = vmatmul.mubr.f32.gmra.mrb[0].mxu0 %v636
        %v830 = vpop.f32.mrb[0].mxu0
        %v831 = vadd.f32 0.0, %v830
        %v832 = vpop.f32.mrb[0].mxu0
        %v833 = vadd.f32 0.0, %v832
        %834 = vmatprep.mubr.f32.mxu0 0.0
        %835 = vmatmul.mubr.f32.gmra.mrb[0].mxu0 %v639
        %v836 = vpop.f32.mrb[0].mxu0
        %v837 = vadd.f32 0.0, %v836
        %v838 = vpop.f32.mrb[0].mxu0
        %v839 = vadd.f32 0.0, %v838
        %840 = vmatprep.mubr.f32.mxu0 0.0
        %841 = vmatmul.mubr.f32.gmra.mrb[0].mxu0 %v642
        %v842 = vpop.f32.mrb[0].mxu0
        %v843 = vadd.f32 0.0, %v842
        %v844 = vpop.f32.mrb[0].mxu0
        %v845 = vadd.f32 0.0, %v844
        %846 = vmatprep.mubr.f32.mxu0 0.0
        %847 = vmatmul.mubr.f32.gmra.mrb[0].mxu0 %v645
        %v848 = vpop.f32.mrb[0].mxu0
        %v849 = vadd.f32 0.0, %v848
        %v850 = vpop.f32.mrb[0].mxu0
        %v851 = vadd.f32 0.0, %v850
        %852 = vmatprep.mubr.f32.mxu0 0.0
        %853 = vmatmul.mubr.f32.gmra.mrb[0].mxu0 %v648
        %v854 = vpop.f32.mrb[0].mxu0
        %v855 = vadd.f32 0.0, %v854
        %v856 = vpop.f32.mrb[0].mxu0
        %v857 = vadd.f32 0.0, %v856
        %858 = vmatprep.mubr.f32.mxu0 0.0
        %859 = vmatmul.mubr.f32.gmra.mrb[0].mxu0 %v651
        %v860 = vpop.f32.mrb[0].mxu0
        %v861 = vadd.f32 0.0, %v860
        %v862 = vpop.f32.mrb[0].mxu0
        %v863 = vadd.f32 0.0, %v862
        %864 = vmatprep.mubr.f32.mxu0 0.0
        %865 = vmatmul.mubr.f32.gmra.mrb[0].mxu0 %v654
        %v866 = vpop.f32.mrb[0].mxu0
        %v867 = vadd.f32 0.0, %v866
        %v868 = vpop.f32.mrb[0].mxu0
        %v869 = vadd.f32 0.0, %v868
        %870 = vmatprep.mubr.f32.mxu0 0.0
        %871 = vmatmul.mubr.f32.gmra.mrb[0].mxu0 %v657
        %v872 = vpop.f32.mrb[0].mxu0
        %v873 = vadd.f32 0.0, %v872
        %v874 = vpop.f32.mrb[0].mxu0
        %v875 = vadd.f32 0.0, %v874
        %876 = vmatprep.mubr.f32.mxu0 0.0
        %877 = vmatmul.mubr.f32.gmra.mrb[0].mxu0 %v660
        %v878 = vpop.f32.mrb[0].mxu0
        %v879 = vadd.f32 0.0, %v878
        %v880 = vpop.f32.mrb[0].mxu0
        %v881 = vadd.f32 0.0, %v880
        %882 = vmatprep.mubr.f32.mxu0 0.0
        %883 = vmatmul.mubr.f32.gmra.mrb[0].mxu0 %v663
        %v884 = vpop.f32.mrb[0].mxu0
        %v885 = vadd.f32 0.0, %v884
        %v886 = vpop.f32.mrb[0].mxu0
        %v887 = vadd.f32 0.0, %v886
        %888 = vmatprep.mubr.f32.mxu0 0.0
        %889 = vmatmul.mubr.f32.gmra.mrb[0].mxu0 %v666
        %v890 = vpop.f32.mrb[0].mxu0
        %v891 = vadd.f32 0.0, %v890
        %v892 = vpop.f32.mrb[0].mxu0
        %v893 = vadd.f32 0.0, %v892
        %894 = vmatprep.mubr.f32.mxu0 0.0
        %895 = vmatmul.mubr.f32.gmra.mrb[0].mxu0 %v669
        %v896 = vpop.f32.mrb[0].mxu0
        %v897 = vadd.f32 0.0, %v896
        %v898 = vpop.f32.mrb[0].mxu0
        %v899 = vadd.f32 0.0, %v898
        %900 = vmatprep.mubr.f32.mxu0 0.0
        %901 = vmatmul.mubr.f32.gmra.mrb[0].mxu0 %v672
        %v902 = vpop.f32.mrb[0].mxu0
        %v903 = vadd.f32 0.0, %v902
        %v904 = vpop.f32.mrb[0].mxu0
        %v905 = vadd.f32 0.0, %v904
        %906 = vmatprep.mubr.f32.mxu0 0.0
        %907 = vmatmul.mubr.f32.gmra.mrb[0].mxu0 %v675
        %v908 = vpop.f32.mrb[0].mxu0
        %v909 = vadd.f32 0.0, %v908
        %v910 = vpop.f32.mrb[0].mxu0
        %v911 = vadd.f32 0.0, %v910
        %912 = vmatprep.mubr.f32.mxu0 0.0
        %913 = vmatmul.mubr.f32.gmra.mrb[0].mxu0 %v678
        %v914 = vpop.f32.mrb[0].mxu0
        %v915 = vadd.f32 0.0, %v914
        %v916 = vpop.f32.mrb[0].mxu0
        %v917 = vadd.f32 0.0, %v916
        %918 = vmatprep.mubr.f32.mxu0 0.0
        %919 = vmatmul.mubr.f32.gmra.mrb[0].mxu0 %v681
        %v920 = vpop.f32.mrb[0].mxu0
        %v921 = vadd.f32 0.0, %v920
        %v922 = vpop.f32.mrb[0].mxu0
        %v923 = vadd.f32 0.0, %v922
        %924 = vmatprep.mubr.f32.mxu0 0.0
        %925 = vmatmul.mubr.f32.gmra.mrb[0].mxu0 %v684
        %v926 = vpop.f32.mrb[0].mxu0
        %v927 = vadd.f32 0.0, %v926
        %v928 = vpop.f32.mrb[0].mxu0
        %v929 = vadd.f32 0.0, %v928
        %930 = vmatprep.mubr.f32.mxu0 0.0
        %931 = vmatmul.mubr.f32.gmra.mrb[0].mxu0 %v687
        %v932 = vpop.f32.mrb[0].mxu0
        %v933 = vadd.f32 0.0, %v932
        %v934 = vpop.f32.mrb[0].mxu0
        %v935 = vadd.f32 0.0, %v934
        %936 = vmatprep.mubr.f32.mxu0 0.0
        %937 = vmatmul.mubr.f32.gmra.mrb[0].mxu0 %v690
        %v938 = vpop.f32.mrb[0].mxu0
        %v939 = vadd.f32 0.0, %v938
        %v940 = vpop.f32.mrb[0].mxu0
        %v941 = vadd.f32 0.0, %v940
        %942 = vmatprep.mubr.f32.mxu0 0.0
        %943 = vmatmul.mubr.f32.gmra.mrb[0].mxu0 %v693
        %v944 = vpop.f32.mrb[0].mxu0
        %v945 = vadd.f32 0.0, %v944
        %v946 = vpop.f32.mrb[0].mxu0
        %v947 = vadd.f32 0.0, %v946
        %948 = vmatprep.mubr.f32.mxu0 0.0
        %949 = vmatmul.mubr.f32.gmra.mrb[0].mxu0 %v696
        %v950 = vpop.f32.mrb[0].mxu0
        %v951 = vadd.f32 0.0, %v950
        %v952 = vpop.f32.mrb[0].mxu0
        %v953 = vadd.f32 0.0, %v952
        %954 = vmatprep.mubr.f32.mxu0 0.0
        %955 = vmatmul.mubr.f32.gmra.mrb[0].mxu0 %v699
        %v956 = vpop.f32.mrb[0].mxu0
        %v957 = vadd.f32 0.0, %v956
        %v958 = vpop.f32.mrb[0].mxu0
        %v959 = vadd.f32 0.0, %v958
        %960 = vmatprep.mubr.f32.mxu0 0.0
        %961 = vmatmul.mubr.f32.gmra.mrb[0].mxu0 %v702
        %v962 = vpop.f32.mrb[0].mxu0
        %v963 = vadd.f32 0.0, %v962
        %v964 = vpop.f32.mrb[0].mxu0
        %v965 = vadd.f32 0.0, %v964
        %966 = vmatprep.mubr.f32.mxu0 0.0
        %967 = vmatmul.mubr.f32.gmra.mrb[0].mxu0 %v705
        %v968 = vpop.f32.mrb[0].mxu0
        %v969 = vadd.f32 0.0, %v968
        %v970 = vpop.f32.mrb[0].mxu0
        %v971 = vadd.f32 0.0, %v970
        %972 = vmatprep.mubr.f32.mxu0 0.0
        %973 = vmatmul.mubr.f32.gmra.mrb[0].mxu0 %v708
        %v974 = vpop.f32.mrb[0].mxu0
        %v975 = vadd.f32 0.0, %v974
        %v976 = vpop.f32.mrb[0].mxu0
        %v977 = vadd.f32 0.0, %v976
        %978 = vmatprep.mubr.f32.mxu0 0.0
        %979 = vmatmul.mubr.f32.gmra.mrb[0].mxu0 %v711
        %v980 = vpop.f32.mrb[0].mxu0
        %v981 = vadd.f32 0.0, %v980
        %v982 = vpop.f32.mrb[0].mxu0
        %v983 = vadd.f32 0.0, %v982
        %984 = vmatprep.mubr.f32.mxu0 0.0
        %985 = vmatmul.mubr.f32.gmra.mrb[0].mxu0 %v714
        %v986 = vpop.f32.mrb[0].mxu0
        %v987 = vadd.f32 0.0, %v986
        %v988 = vpop.f32.mrb[0].mxu0
        %v989 = vadd.f32 0.0, %v988
        %990 = vmatprep.mubr.f32.mxu0 0.0
        %991 = vmatmul.mubr.f32.gmra.mrb[0].mxu0 %v717
        %v992 = vpop.f32.mrb[0].mxu0
        %v993 = vadd.f32 0.0, %v992
        %v994 = vpop.f32.mrb[0].mxu0
        %v995 = vadd.f32 0.0, %v994
        %996 = vmatprep.mubr.f32.mxu0 0.0
        %997 = vmatmul.mubr.f32.gmra.mrb[0].mxu0 %v720
        %v998 = vpop.f32.mrb[0].mxu0
        %v999 = vadd.f32 0.0, %v998
        %v1000 = vpop.f32.mrb[0].mxu0
        %v1001 = vadd.f32 0.0, %v1000
        %1002 = vmatprep.mubr.f32.mxu0 0.0
        %1003 = vmatmul.mubr.f32.gmra.mrb[0].mxu0 %v723
        %v1004 = vpop.f32.mrb[0].mxu0
        %v1005 = vadd.f32 0.0, %v1004
        %v1006 = vpop.f32.mrb[0].mxu0
        %v1007 = vadd.f32 0.0, %v1006
        %1008 = vmatprep.mubr.f32.mxu0 0.0
        %1009 = vmatmul.mubr.f32.gmra.mrb[0].mxu0 %v726
        %v1010 = vpop.f32.mrb[0].mxu0
        %v1011 = vadd.f32 0.0, %v1010
        %v1012 = vpop.f32.mrb[0].mxu0
        %v1013 = vadd.f32 0.0, %v1012
        %1014 = vmatprep.mubr.f32.mxu0 0.0
        %1015 = vmatmul.mubr.f32.gmra.mrb[0].mxu0 %v729
        %v1016 = vpop.f32.mrb[0].mxu0
        %v1017 = vadd.f32 0.0, %v1016
        %v1018 = vpop.f32.mrb[0].mxu0
        %v1019 = vadd.f32 0.0, %v1018
        %1020 = vmatprep.mubr.f32.mxu0 0.0
        %1021 = vmatmul.mubr.f32.gmra.mrb[0].mxu0 %v732
        %v1022 = vpop.f32.mrb[0].mxu0
        %v1023 = vadd.f32 0.0, %v1022
        %v1024 = vpop.f32.mrb[0].mxu0
        %v1025 = vadd.f32 0.0, %v1024
        %1026 = vdwg.mxu0
        %1027 = vmatprep.subr.mxu0 0.0
        %1028 = vmatpush1.msra.mxu0 %v616
        %1029 = vmatprep.subr.mxu0 0.0
        %1030 = vmatpush1.msra.mxu0 %v619
        %1031 = vmatprep.subr.mxu0 0.0
        %1032 = vmatpush1.msra.mxu0 0.0
        %1033 = vmatprep.subr.mxu0 0.0
        %1034 = vmatpush1.msra.mxu0 0.0
        %1035 = vmatprep.subr.mxu0 0.0
        %1036 = vmatpush1.msra.mxu0 0.0
        %1037 = vmatprep.subr.mxu0 0.0
        %1038 = vmatpush1.msra.mxu0 0.0
        %1039 = vmatprep.subr.mxu0 0.0
        %1040 = vmatpush1.msra.mxu0 0.0
        %1041 = vmatprep.subr.mxu0 0.0
        %1042 = vmatpush1.msra.mxu0 0.0
        %1043 = vmatprep.subr.mxu0 0.0
        %1044 = vmatpush1.msra.mxu0 0.0
        %1045 = vmatprep.subr.mxu0 0.0
        %1046 = vmatpush1.msra.mxu0 0.0
        %1047 = vmatprep.subr.mxu0 0.0
        %1048 = vmatpush1.msra.mxu0 0.0
        %1049 = vmatprep.subr.mxu0 0.0
        %1050 = vmatpush1.msra.mxu0 0.0
        %1051 = vmatprep.subr.mxu0 0.0
        %1052 = vmatpush1.msra.mxu0 0.0
        %1053 = vmatprep.subr.mxu0 0.0
        %1054 = vmatpush1.msra.mxu0 0.0
        %1055 = vmatprep.subr.mxu0 0.0
        %1056 = vmatpush1.msra.mxu0 0.0
        %1057 = vmatprep.subr.mxu0 0.0
        %1058 = vmatpush1.msra.mxu0 0.0
        %1059 = vmatprep.subr.mxu0 0.0
        %1060 = vmatpush1.msra.mxu0 0.0
        %1061 = vmatprep.subr.mxu0 0.0
        %1062 = vmatpush1.msra.mxu0 0.0
        %1063 = vmatprep.subr.mxu0 0.0
        %1064 = vmatpush1.msra.mxu0 0.0
        %1065 = vmatprep.subr.mxu0 0.0
        %1066 = vmatpush1.msra.mxu0 0.0
        %1067 = vmatprep.subr.mxu0 0.0
        %1068 = vmatpush1.msra.mxu0 0.0
        %1069 = vmatprep.subr.mxu0 0.0
        %1070 = vmatpush1.msra.mxu0 0.0
        %1071 = vmatprep.subr.mxu0 0.0
        %1072 = vmatpush1.msra.mxu0 0.0
        %1073 = vmatprep.subr.mxu0 0.0
        %1074 = vmatpush1.msra.mxu0 0.0
        %1075 = vmatprep.subr.mxu0 0.0
        %1076 = vmatpush1.msra.mxu0 0.0
        %1077 = vmatprep.subr.mxu0 0.0
        %1078 = vmatpush1.msra.mxu0 0.0
        %1079 = vmatprep.subr.mxu0 0.0
        %1080 = vmatpush1.msra.mxu0 0.0
        %1081 = vmatprep.subr.mxu0 0.0
        %1082 = vmatpush1.msra.mxu0 0.0
        %1083 = vmatprep.subr.mxu0 0.0
        %1084 = vmatpush1.msra.mxu0 0.0
        %1085 = vmatprep.subr.mxu0 0.0
        %1086 = vmatpush1.msra.mxu0 0.0
        %1087 = vmatprep.subr.mxu0 0.0
        %1088 = vmatpush1.msra.mxu0 0.0
        %1089 = vmatprep.subr.mxu0 0.0
        %1090 = vmatpush1.msra.mxu0 0.0
        %1091 = vmatprep.mubr.f32.mxu0 0.0
        %1092 = vmatmul.mubr.f32.gmra.mrb[0].mxu0 %v621
        %v1093 = vpop.f32.mrb[0].mxu0
        %v1094 = vadd.f32 0.0, %v1093
        %v1095 = vpop.f32.mrb[0].mxu0
        %1096 = vmatprep.mubr.f32.mxu0 0.0
        %1097 = vmatmul.mubr.f32.gmra.mrb[0].mxu0 %v624
        %v1098 = vpop.f32.mrb[0].mxu0
        %v1099 = vadd.f32 0.0, %v1098
        %v1100 = vpop.f32.mrb[0].mxu0
        %1101 = vmatprep.mubr.f32.mxu0 0.0
        %1102 = vmatmul.mubr.f32.gmra.mrb[0].mxu0 %v627
        %v1103 = vpop.f32.mrb[0].mxu0
        %v1104 = vadd.f32 0.0, %v1103
        %v1105 = vpop.f32.mrb[0].mxu0
        %1106 = vmatprep.mubr.f32.mxu0 0.0
        %1107 = vmatmul.mubr.f32.gmra.mrb[0].mxu0 %v630
        %v1108 = vpop.f32.mrb[0].mxu0
        %v1109 = vadd.f32 0.0, %v1108
        %v1110 = vpop.f32.mrb[0].mxu0
        %1111 = vmatprep.mubr.f32.mxu0 0.0
        %1112 = vmatmul.mubr.f32.gmra.mrb[0].mxu0 %v633
        %v1113 = vpop.f32.mrb[0].mxu0
        %v1114 = vadd.f32 0.0, %v1113
        %v1115 = vpop.f32.mrb[0].mxu0
        %1116 = vmatprep.mubr.f32.mxu0 0.0
        %1117 = vmatmul.mubr.f32.gmra.mrb[0].mxu0 %v636
        %v1118 = vpop.f32.mrb[0].mxu0
        %v1119 = vadd.f32 0.0, %v1118
        %v1120 = vpop.f32.mrb[0].mxu0
        %1121 = vmatprep.mubr.f32.mxu0 0.0
        %1122 = vmatmul.mubr.f32.gmra.mrb[0].mxu0 %v639
        %v1123 = vpop.f32.mrb[0].mxu0
        %v1124 = vadd.f32 0.0, %v1123
        %v1125 = vpop.f32.mrb[0].mxu0
        %1126 = vmatprep.mubr.f32.mxu0 0.0
        %1127 = vmatmul.mubr.f32.gmra.mrb[0].mxu0 %v642
        %v1128 = vpop.f32.mrb[0].mxu0
        %v1129 = vadd.f32 0.0, %v1128
        %v1130 = vpop.f32.mrb[0].mxu0
        %1131 = vmatprep.mubr.f32.mxu0 0.0
        %1132 = vmatmul.mubr.f32.gmra.mrb[0].mxu0 %v645
        %v1133 = vpop.f32.mrb[0].mxu0
        %v1134 = vadd.f32 0.0, %v1133
        %v1135 = vpop.f32.mrb[0].mxu0
        %1136 = vmatprep.mubr.f32.mxu0 0.0
        %1137 = vmatmul.mubr.f32.gmra.mrb[0].mxu0 %v648
        %v1138 = vpop.f32.mrb[0].mxu0
        %v1139 = vadd.f32 0.0, %v1138
        %v1140 = vpop.f32.mrb[0].mxu0
        %1141 = vmatprep.mubr.f32.mxu0 0.0
        %1142 = vmatmul.mubr.f32.gmra.mrb[0].mxu0 %v651
        %v1143 = vpop.f32.mrb[0].mxu0
        %v1144 = vadd.f32 0.0, %v1143
        %v1145 = vpop.f32.mrb[0].mxu0
        %1146 = vmatprep.mubr.f32.mxu0 0.0
        %1147 = vmatmul.mubr.f32.gmra.mrb[0].mxu0 %v654
        %v1148 = vpop.f32.mrb[0].mxu0
        %v1149 = vadd.f32 0.0, %v1148
        %v1150 = vpop.f32.mrb[0].mxu0
        %1151 = vmatprep.mubr.f32.mxu0 0.0
        %1152 = vmatmul.mubr.f32.gmra.mrb[0].mxu0 %v657
        %v1153 = vpop.f32.mrb[0].mxu0
        %v1154 = vadd.f32 0.0, %v1153
        %v1155 = vpop.f32.mrb[0].mxu0
        %1156 = vmatprep.mubr.f32.mxu0 0.0
        %1157 = vmatmul.mubr.f32.gmra.mrb[0].mxu0 %v660
        %v1158 = vpop.f32.mrb[0].mxu0
        %v1159 = vadd.f32 0.0, %v1158
        %v1160 = vpop.f32.mrb[0].mxu0
        %1161 = vmatprep.mubr.f32.mxu0 0.0
        %1162 = vmatmul.mubr.f32.gmra.mrb[0].mxu0 %v663
        %v1163 = vpop.f32.mrb[0].mxu0
        %v1164 = vadd.f32 0.0, %v1163
        %v1165 = vpop.f32.mrb[0].mxu0
        %1166 = vmatprep.mubr.f32.mxu0 0.0
        %1167 = vmatmul.mubr.f32.gmra.mrb[0].mxu0 %v666
        %v1168 = vpop.f32.mrb[0].mxu0
        %v1169 = vadd.f32 0.0, %v1168
        %v1170 = vpop.f32.mrb[0].mxu0
        %1171 = vmatprep.mubr.f32.mxu0 0.0
        %1172 = vmatmul.mubr.f32.gmra.mrb[0].mxu0 %v669
        %v1173 = vpop.f32.mrb[0].mxu0
        %v1174 = vadd.f32 0.0, %v1173
        %v1175 = vpop.f32.mrb[0].mxu0
        %1176 = vmatprep.mubr.f32.mxu0 0.0
        %1177 = vmatmul.mubr.f32.gmra.mrb[0].mxu0 %v672
        %v1178 = vpop.f32.mrb[0].mxu0
        %v1179 = vadd.f32 0.0, %v1178
        %v1180 = vpop.f32.mrb[0].mxu0
        %1181 = vmatprep.mubr.f32.mxu0 0.0
        %1182 = vmatmul.mubr.f32.gmra.mrb[0].mxu0 %v675
        %v1183 = vpop.f32.mrb[0].mxu0
        %v1184 = vadd.f32 0.0, %v1183
        %v1185 = vpop.f32.mrb[0].mxu0
        %1186 = vmatprep.mubr.f32.mxu0 0.0
        %1187 = vmatmul.mubr.f32.gmra.mrb[0].mxu0 %v678
        %v1188 = vpop.f32.mrb[0].mxu0
        %v1189 = vadd.f32 0.0, %v1188
        %v1190 = vpop.f32.mrb[0].mxu0
        %1191 = vmatprep.mubr.f32.mxu0 0.0
        %1192 = vmatmul.mubr.f32.gmra.mrb[0].mxu0 %v681
        %v1193 = vpop.f32.mrb[0].mxu0
        %v1194 = vadd.f32 0.0, %v1193
        %v1195 = vpop.f32.mrb[0].mxu0
        %1196 = vmatprep.mubr.f32.mxu0 0.0
        %1197 = vmatmul.mubr.f32.gmra.mrb[0].mxu0 %v684
        %v1198 = vpop.f32.mrb[0].mxu0
        %v1199 = vadd.f32 0.0, %v1198
        %v1200 = vpop.f32.mrb[0].mxu0
        %1201 = vmatprep.mubr.f32.mxu0 0.0
        %1202 = vmatmul.mubr.f32.gmra.mrb[0].mxu0 %v687
        %v1203 = vpop.f32.mrb[0].mxu0
        %v1204 = vadd.f32 0.0, %v1203
        %v1205 = vpop.f32.mrb[0].mxu0
        %1206 = vmatprep.mubr.f32.mxu0 0.0
        %1207 = vmatmul.mubr.f32.gmra.mrb[0].mxu0 %v690
        %v1208 = vpop.f32.mrb[0].mxu0
        %v1209 = vadd.f32 0.0, %v1208
        %v1210 = vpop.f32.mrb[0].mxu0
        %1211 = vmatprep.mubr.f32.mxu0 0.0
        %1212 = vmatmul.mubr.f32.gmra.mrb[0].mxu0 %v693
        %v1213 = vpop.f32.mrb[0].mxu0
        %v1214 = vadd.f32 0.0, %v1213
        %v1215 = vpop.f32.mrb[0].mxu0
        %1216 = vmatprep.mubr.f32.mxu0 0.0
        %1217 = vmatmul.mubr.f32.gmra.mrb[0].mxu0 %v696
        %v1218 = vpop.f32.mrb[0].mxu0
        %v1219 = vadd.f32 0.0, %v1218
        %v1220 = vpop.f32.mrb[0].mxu0
        %1221 = vmatprep.mubr.f32.mxu0 0.0
        %1222 = vmatmul.mubr.f32.gmra.mrb[0].mxu0 %v699
        %v1223 = vpop.f32.mrb[0].mxu0
        %v1224 = vadd.f32 0.0, %v1223
        %v1225 = vpop.f32.mrb[0].mxu0
        %1226 = vmatprep.mubr.f32.mxu0 0.0
        %1227 = vmatmul.mubr.f32.gmra.mrb[0].mxu0 %v702
        %v1228 = vpop.f32.mrb[0].mxu0
        %v1229 = vadd.f32 0.0, %v1228
        %v1230 = vpop.f32.mrb[0].mxu0
        %1231 = vmatprep.mubr.f32.mxu0 0.0
        %1232 = vmatmul.mubr.f32.gmra.mrb[0].mxu0 %v705
        %v1233 = vpop.f32.mrb[0].mxu0
        %v1234 = vadd.f32 0.0, %v1233
        %v1235 = vpop.f32.mrb[0].mxu0
        %1236 = vmatprep.mubr.f32.mxu0 0.0
        %1237 = vmatmul.mubr.f32.gmra.mrb[0].mxu0 %v708
        %v1238 = vpop.f32.mrb[0].mxu0
        %v1239 = vadd.f32 0.0, %v1238
        %v1240 = vpop.f32.mrb[0].mxu0
        %1241 = vmatprep.mubr.f32.mxu0 0.0
        %1242 = vmatmul.mubr.f32.gmra.mrb[0].mxu0 %v711
        %v1243 = vpop.f32.mrb[0].mxu0
        %v1244 = vadd.f32 0.0, %v1243
        %v1245 = vpop.f32.mrb[0].mxu0
        %1246 = vmatprep.mubr.f32.mxu0 0.0
        %1247 = vmatmul.mubr.f32.gmra.mrb[0].mxu0 %v714
        %v1248 = vpop.f32.mrb[0].mxu0
        %v1249 = vadd.f32 0.0, %v1248
        %v1250 = vpop.f32.mrb[0].mxu0
        %1251 = vmatprep.mubr.f32.mxu0 0.0
        %1252 = vmatmul.mubr.f32.gmra.mrb[0].mxu0 %v717
        %v1253 = vpop.f32.mrb[0].mxu0
        %v1254 = vadd.f32 0.0, %v1253
        %v1255 = vpop.f32.mrb[0].mxu0
        %1256 = vmatprep.mubr.f32.mxu0 0.0
        %1257 = vmatmul.mubr.f32.gmra.mrb[0].mxu0 %v720
        %v1258 = vpop.f32.mrb[0].mxu0
        %v1259 = vadd.f32 0.0, %v1258
        %v1260 = vpop.f32.mrb[0].mxu0
        %1261 = vmatprep.mubr.f32.mxu0 0.0
        %1262 = vmatmul.mubr.f32.gmra.mrb[0].mxu0 %v723
        %v1263 = vpop.f32.mrb[0].mxu0
        %v1264 = vadd.f32 0.0, %v1263
        %v1265 = vpop.f32.mrb[0].mxu0
        %1266 = vmatprep.mubr.f32.mxu0 0.0
        %1267 = vmatmul.mubr.f32.gmra.mrb[0].mxu0 %v726
        %v1268 = vpop.f32.mrb[0].mxu0
        %v1269 = vadd.f32 0.0, %v1268
        %v1270 = vpop.f32.mrb[0].mxu0
        %1271 = vmatprep.mubr.f32.mxu0 0.0
        %1272 = vmatmul.mubr.f32.gmra.mrb[0].mxu0 %v729
        %v1273 = vpop.f32.mrb[0].mxu0
        %v1274 = vadd.f32 0.0, %v1273
        %v1275 = vpop.f32.mrb[0].mxu0
        %1276 = vmatprep.mubr.f32.mxu0 0.0
        %1277 = vmatmul.mubr.f32.gmra.mrb[0].mxu0 %v732
        %v1278 = vpop.f32.mrb[0].mxu0
        %v1279 = vadd.f32 0.0, %v1278
        %v1280 = vpop.f32.mrb[0].mxu0
        %1281 = vdwg.mxu0
        %v1282 = vmul.f32 %v801, 2.0
        %v1283 = vmul.f32 %v803, 2.0
        %v1284 = vmul.f32 %v1094, 2.0
        %v1285 = vmul.f32 %v807, 2.0
        %v1286 = vmul.f32 %v809, 2.0
        %v1287 = vmul.f32 %v1099, 2.0
        %v1288 = vmul.f32 %v813, 2.0
        %v1289 = vmul.f32 %v815, 2.0
        %v1290 = vmul.f32 %v1104, 2.0
        %v1291 = vmul.f32 %v819, 2.0
        %v1292 = vmul.f32 %v821, 2.0
        %v1293 = vmul.f32 %v1109, 2.0
        %v1294 = vmul.f32 %v825, 2.0
        %v1295 = vmul.f32 %v827, 2.0
        %v1296 = vmul.f32 %v1114, 2.0
        %v1297 = vmul.f32 %v831, 2.0
        %v1298 = vmul.f32 %v833, 2.0
        %v1299 = vmul.f32 %v1119, 2.0
        %v1300 = vmul.f32 %v837, 2.0
        %v1301 = vmul.f32 %v839, 2.0
        %v1302 = vmul.f32 %v1124, 2.0
        %v1303 = vmul.f32 %v843, 2.0
        %v1304 = vmul.f32 %v845, 2.0
        %v1305 = vmul.f32 %v1129, 2.0
        %v1306 = vmul.f32 %v849, 2.0
        %v1307 = vmul.f32 %v851, 2.0
        %v1308 = vmul.f32 %v1134, 2.0
        %v1309 = vmul.f32 %v855, 2.0
        %v1310 = vmul.f32 %v857, 2.0
        %v1311 = vmul.f32 %v1139, 2.0
        %v1312 = vmul.f32 %v861, 2.0
        %v1313 = vmul.f32 %v863, 2.0
        %v1314 = vmul.f32 %v1144, 2.0
        %v1315 = vmul.f32 %v867, 2.0
        %v1316 = vmul.f32 %v869, 2.0
        %v1317 = vmul.f32 %v1149, 2.0
        %v1318 = vmul.f32 %v873, 2.0
        %v1319 = vmul.f32 %v875, 2.0
        %v1320 = vmul.f32 %v1154, 2.0
        %v1321 = vmul.f32 %v879, 2.0
        %v1322 = vmul.f32 %v881, 2.0
        %v1323 = vmul.f32 %v1159, 2.0
        %v1324 = vmul.f32 %v885, 2.0
        %v1325 = vmul.f32 %v887, 2.0
        %v1326 = vmul.f32 %v1164, 2.0
        %v1327 = vmul.f32 %v891, 2.0
        %v1328 = vmul.f32 %v893, 2.0
        %v1329 = vmul.f32 %v1169, 2.0
        %v1330 = vmul.f32 %v897, 2.0
        %v1331 = vmul.f32 %v899, 2.0
        %v1332 = vmul.f32 %v1174, 2.0
        %v1333 = vmul.f32 %v903, 2.0
        %v1334 = vmul.f32 %v905, 2.0
        %v1335 = vmul.f32 %v1179, 2.0
        %v1336 = vmul.f32 %v909, 2.0
        %v1337 = vmul.f32 %v911, 2.0
        %v1338 = vmul.f32 %v1184, 2.0
        %v1339 = vmul.f32 %v915, 2.0
        %v1340 = vmul.f32 %v917, 2.0
        %v1341 = vmul.f32 %v1189, 2.0
        %v1342 = vmul.f32 %v921, 2.0
        %v1343 = vmul.f32 %v923, 2.0
        %v1344 = vmul.f32 %v1194, 2.0
        %v1345 = vmul.f32 %v927, 2.0
        %v1346 = vmul.f32 %v929, 2.0
        %v1347 = vmul.f32 %v1199, 2.0
        %v1348 = vmul.f32 %v933, 2.0
        %v1349 = vmul.f32 %v935, 2.0
        %v1350 = vmul.f32 %v1204, 2.0
        %v1351 = vmul.f32 %v939, 2.0
        %v1352 = vmul.f32 %v941, 2.0
        %v1353 = vmul.f32 %v1209, 2.0
        %v1354 = vmul.f32 %v945, 2.0
        %v1355 = vmul.f32 %v947, 2.0
        %v1356 = vmul.f32 %v1214, 2.0
        %v1357 = vmul.f32 %v951, 2.0
        %v1358 = vmul.f32 %v953, 2.0
        %v1359 = vmul.f32 %v1219, 2.0
        %v1360 = vmul.f32 %v957, 2.0
        %v1361 = vmul.f32 %v959, 2.0
        %v1362 = vmul.f32 %v1224, 2.0
        %v1363 = vmul.f32 %v963, 2.0
        %v1364 = vmul.f32 %v965, 2.0
        %v1365 = vmul.f32 %v1229, 2.0
        %v1366 = vmul.f32 %v969, 2.0
        %v1367 = vmul.f32 %v971, 2.0
        %v1368 = vmul.f32 %v1234, 2.0
        %v1369 = vmul.f32 %v975, 2.0
        %v1370 = vmul.f32 %v977, 2.0
        %v1371 = vmul.f32 %v1239, 2.0
        %v1372 = vmul.f32 %v981, 2.0
        %v1373 = vmul.f32 %v983, 2.0
        %v1374 = vmul.f32 %v1244, 2.0
        %v1375 = vmul.f32 %v987, 2.0
        %v1376 = vmul.f32 %v989, 2.0
        %v1377 = vmul.f32 %v1249, 2.0
        %v1378 = vmul.f32 %v993, 2.0
        %v1379 = vmul.f32 %v995, 2.0
        %v1380 = vmul.f32 %v1254, 2.0
        %v1381 = vmul.f32 %v999, 2.0
        %v1382 = vmul.f32 %v1001, 2.0
        %v1383 = vmul.f32 %v1259, 2.0
        %v1384 = vmul.f32 %v1005, 2.0
        %v1385 = vmul.f32 %v1007, 2.0
        %v1386 = vmul.f32 %v1264, 2.0
        %v1387 = vmul.f32 %v1011, 2.0
        %v1388 = vmul.f32 %v1013, 2.0
        %v1389 = vmul.f32 %v1269, 2.0
        %v1390 = vmul.f32 %v1017, 2.0
        %v1391 = vmul.f32 %v1019, 2.0
        %v1392 = vmul.f32 %v1274, 2.0
        %v1393 = vmul.f32 %v1023, 2.0
        %v1394 = vmul.f32 %v1025, 2.0
        %v1395 = vmul.f32 %v1279, 2.0
        %v1396 = vsub.f32 %v1282, 1.0
        %v1397 = vsub.f32 %v1283, 1.0
        %v1398 = vsub.f32 %v1284, 1.0
        %v1399 = vsub.f32 %v1285, 1.0
        %v1400 = vsub.f32 %v1286, 1.0
        %v1401 = vsub.f32 %v1287, 1.0
        %v1402 = vsub.f32 %v1288, 1.0
        %v1403 = vsub.f32 %v1289, 1.0
        %v1404 = vsub.f32 %v1290, 1.0
        %v1405 = vsub.f32 %v1291, 1.0
        %v1406 = vsub.f32 %v1292, 1.0
        %v1407 = vsub.f32 %v1293, 1.0
        %v1408 = vsub.f32 %v1294, 1.0
        %v1409 = vsub.f32 %v1295, 1.0
        %v1410 = vsub.f32 %v1296, 1.0
        %v1411 = vsub.f32 %v1297, 1.0
        %v1412 = vsub.f32 %v1298, 1.0
        %v1413 = vsub.f32 %v1299, 1.0
        %v1414 = vsub.f32 %v1300, 1.0
        %v1415 = vsub.f32 %v1301, 1.0
        %v1416 = vsub.f32 %v1302, 1.0
        %v1417 = vsub.f32 %v1303, 1.0
        %v1418 = vsub.f32 %v1304, 1.0
        %v1419 = vsub.f32 %v1305, 1.0
        %v1420 = vsub.f32 %v1306, 1.0
        %v1421 = vsub.f32 %v1307, 1.0
        %v1422 = vsub.f32 %v1308, 1.0
        %v1423 = vsub.f32 %v1309, 1.0
        %v1424 = vsub.f32 %v1310, 1.0
        %v1425 = vsub.f32 %v1311, 1.0
        %v1426 = vsub.f32 %v1312, 1.0
        %v1427 = vsub.f32 %v1313, 1.0
        %v1428 = vsub.f32 %v1314, 1.0
        %v1429 = vsub.f32 %v1315, 1.0
        %v1430 = vsub.f32 %v1316, 1.0
        %v1431 = vsub.f32 %v1317, 1.0
        %v1432 = vsub.f32 %v1318, 1.0
        %v1433 = vsub.f32 %v1319, 1.0
        %v1434 = vsub.f32 %v1320, 1.0
        %v1435 = vsub.f32 %v1321, 1.0
        %v1436 = vsub.f32 %v1322, 1.0
        %v1437 = vsub.f32 %v1323, 1.0
        %v1438 = vsub.f32 %v1324, 1.0
        %v1439 = vsub.f32 %v1325, 1.0
        %v1440 = vsub.f32 %v1326, 1.0
        %v1441 = vsub.f32 %v1327, 1.0
        %v1442 = vsub.f32 %v1328, 1.0
        %v1443 = vsub.f32 %v1329, 1.0
        %v1444 = vsub.f32 %v1330, 1.0
        %v1445 = vsub.f32 %v1331, 1.0
        %v1446 = vsub.f32 %v1332, 1.0
        %v1447 = vsub.f32 %v1333, 1.0
        %v1448 = vsub.f32 %v1334, 1.0
        %v1449 = vsub.f32 %v1335, 1.0
        %v1450 = vsub.f32 %v1336, 1.0
        %v1451 = vsub.f32 %v1337, 1.0
        %v1452 = vsub.f32 %v1338, 1.0
        %v1453 = vsub.f32 %v1339, 1.0
        %v1454 = vsub.f32 %v1340, 1.0
        %v1455 = vsub.f32 %v1341, 1.0
        %v1456 = vsub.f32 %v1342, 1.0
        %v1457 = vsub.f32 %v1343, 1.0
        %v1458 = vsub.f32 %v1344, 1.0
        %v1459 = vsub.f32 %v1345, 1.0
        %v1460 = vsub.f32 %v1346, 1.0
        %v1461 = vsub.f32 %v1347, 1.0
        %v1462 = vsub.f32 %v1348, 1.0
        %v1463 = vsub.f32 %v1349, 1.0
        %v1464 = vsub.f32 %v1350, 1.0
        %v1465 = vsub.f32 %v1351, 1.0
        %v1466 = vsub.f32 %v1352, 1.0
        %v1467 = vsub.f32 %v1353, 1.0
        %v1468 = vsub.f32 %v1354, 1.0
        %v1469 = vsub.f32 %v1355, 1.0
        %v1470 = vsub.f32 %v1356, 1.0
        %v1471 = vsub.f32 %v1357, 1.0
        %v1472 = vsub.f32 %v1358, 1.0
        %v1473 = vsub.f32 %v1359, 1.0
        %v1474 = vsub.f32 %v1360, 1.0
        %v1475 = vsub.f32 %v1361, 1.0
        %v1476 = vsub.f32 %v1362, 1.0
        %v1477 = vsub.f32 %v1363, 1.0
        %v1478 = vsub.f32 %v1364, 1.0
        %v1479 = vsub.f32 %v1365, 1.0
        %v1480 = vsub.f32 %v1366, 1.0
        %v1481 = vsub.f32 %v1367, 1.0
        %v1482 = vsub.f32 %v1368, 1.0
        %v1483 = vsub.f32 %v1369, 1.0
        %v1484 = vsub.f32 %v1370, 1.0
        %v1485 = vsub.f32 %v1371, 1.0
        %v1486 = vsub.f32 %v1372, 1.0
        %v1487 = vsub.f32 %v1373, 1.0
        %v1488 = vsub.f32 %v1374, 1.0
        %v1489 = vsub.f32 %v1375, 1.0
        %v1490 = vsub.f32 %v1376, 1.0
        %v1491 = vsub.f32 %v1377, 1.0
        %v1492 = vsub.f32 %v1378, 1.0
        %v1493 = vsub.f32 %v1379, 1.0
        %v1494 = vsub.f32 %v1380, 1.0
        %v1495 = vsub.f32 %v1381, 1.0
        %v1496 = vsub.f32 %v1382, 1.0
        %v1497 = vsub.f32 %v1383, 1.0
        %v1498 = vsub.f32 %v1384, 1.0
        %v1499 = vsub.f32 %v1385, 1.0
        %v1500 = vsub.f32 %v1386, 1.0
        %v1501 = vsub.f32 %v1387, 1.0
        %v1502 = vsub.f32 %v1388, 1.0
        %v1503 = vsub.f32 %v1389, 1.0
        %v1504 = vsub.f32 %v1390, 1.0
        %v1505 = vsub.f32 %v1391, 1.0
        %v1506 = vsub.f32 %v1392, 1.0
        %v1507 = vsub.f32 %v1393, 1.0
        %v1508 = vsub.f32 %v1394, 1.0
        %v1509 = vsub.f32 %v1395, 1.0
        %1510 = vst [vmem:[%s203] sm:$0xff] %v1396
        %1511 = vst [vmem:[%s203 + $0x8] sm:$0xff] %v1397
        %vm1512 = vcmask 351232
        %1513 = vst.msk [vmem:[%s203 + $0x10] sm:$0xff] %vm1512, %v1398
        %1514 = vst [vmem:[%s203 + $0x18] sm:$0xff] %v1399
        %1515 = vst [vmem:[%s203 + $0x20] sm:$0xff] %v1400
        %1516 = vst.msk [vmem:[%s203 + $0x28] sm:$0xff] %vm1512, %v1401
        %1517 = vst [vmem:[%s203 + $0x30] sm:$0xff] %v1402
        %1518 = vst [vmem:[%s203 + $0x38] sm:$0xff] %v1403
        %1519 = vst.msk [vmem:[%s203 + $0x40] sm:$0xff] %vm1512, %v1404
        %1520 = vst [vmem:[%s203 + $0x48] sm:$0xff] %v1405
        %1521 = vst [vmem:[%s203 + $0x50] sm:$0xff] %v1406
        %1522 = vst.msk [vmem:[%s203 + $0x58] sm:$0xff] %vm1512, %v1407
        %1523 = vst [vmem:[%s203 + $0x60] sm:$0xff] %v1408
        %1524 = vst [vmem:[%s203 + $0x68] sm:$0xff] %v1409
        %1525 = vst.msk [vmem:[%s203 + $0x70] sm:$0xff] %vm1512, %v1410
        %1526 = vst [vmem:[%s203 + $0x78] sm:$0xff] %v1411
        %1527 = vst [vmem:[%s203 + $0x80] sm:$0xff] %v1412
        %1528 = vst.msk [vmem:[%s203 + $0x88] sm:$0xff] %vm1512, %v1413
        %1529 = vst [vmem:[%s203 + $0x90] sm:$0xff] %v1414
        %1530 = vst [vmem:[%s203 + $0x98] sm:$0xff] %v1415
        %1531 = vst.msk [vmem:[%s203 + $0xa0] sm:$0xff] %vm1512, %v1416
        %1532 = vst [vmem:[%s203 + $0xa8] sm:$0xff] %v1417
        %1533 = vst [vmem:[%s203 + $0xb0] sm:$0xff] %v1418
        %1534 = vst.msk [vmem:[%s203 + $0xb8] sm:$0xff] %vm1512, %v1419
        %1535 = vst [vmem:[%s203 + $0xc0] sm:$0xff] %v1420
        %1536 = vst [vmem:[%s203 + $0xc8] sm:$0xff] %v1421
        %1537 = vst.msk [vmem:[%s203 + $0xd0] sm:$0xff] %vm1512, %v1422
        %1538 = vst [vmem:[%s203 + $0xd8] sm:$0xff] %v1423
        %1539 = vst [vmem:[%s203 + $0xe0] sm:$0xff] %v1424
        %1540 = vst.msk [vmem:[%s203 + $0xe8] sm:$0xff] %vm1512, %v1425
        %1541 = vst [vmem:[%s203 + $0xf0] sm:$0xff] %v1426
        %1542 = vst [vmem:[%s203 + $0xf8] sm:$0xff] %v1427
        %1543 = vst.msk [vmem:[%s203 + $0x100] sm:$0xff] %vm1512, %v1428
        %1544 = vst [vmem:[%s203 + $0x108] sm:$0xff] %v1429
        %1545 = vst [vmem:[%s203 + $0x110] sm:$0xff] %v1430
        %1546 = vst.msk [vmem:[%s203 + $0x118] sm:$0xff] %vm1512, %v1431
        %1547 = vst [vmem:[%s203 + $0x120] sm:$0xff] %v1432
        %1548 = vst [vmem:[%s203 + $0x128] sm:$0xff] %v1433
        %1549 = vst.msk [vmem:[%s203 + $0x130] sm:$0xff] %vm1512, %v1434
        %1550 = vst [vmem:[%s203 + $0x138] sm:$0xff] %v1435
        %1551 = vst [vmem:[%s203 + $0x140] sm:$0xff] %v1436
        %1552 = vst.msk [vmem:[%s203 + $0x148] sm:$0xff] %vm1512, %v1437
        %1553 = vst [vmem:[%s203 + $0x150] sm:$0xff] %v1438
        %1554 = vst [vmem:[%s203 + $0x158] sm:$0xff] %v1439
        %1555 = vst.msk [vmem:[%s203 + $0x160] sm:$0xff] %vm1512, %v1440
        %1556 = vst [vmem:[%s203 + $0x168] sm:$0xff] %v1441
        %1557 = vst [vmem:[%s203 + $0x170] sm:$0xff] %v1442
        %1558 = vst.msk [vmem:[%s203 + $0x178] sm:$0xff] %vm1512, %v1443
        %1559 = vst [vmem:[%s203 + $0x180] sm:$0xff] %v1444
        %1560 = vst [vmem:[%s203 + $0x188] sm:$0xff] %v1445
        %1561 = vst.msk [vmem:[%s203 + $0x190] sm:$0xff] %vm1512, %v1446
        %1562 = vst [vmem:[%s203 + $0x198] sm:$0xff] %v1447
        %1563 = vst [vmem:[%s203 + $0x1a0] sm:$0xff] %v1448
        %1564 = vst.msk [vmem:[%s203 + $0x1a8] sm:$0xff] %vm1512, %v1449
        %1565 = vst [vmem:[%s203 + $0x1b0] sm:$0xff] %v1450
        %1566 = vst [vmem:[%s203 + $0x1b8] sm:$0xff] %v1451
        %1567 = vst.msk [vmem:[%s203 + $0x1c0] sm:$0xff] %vm1512, %v1452
        %1568 = vst [vmem:[%s203 + $0x1c8] sm:$0xff] %v1453
        %1569 = vst [vmem:[%s203 + $0x1d0] sm:$0xff] %v1454
        %1570 = vst.msk [vmem:[%s203 + $0x1d8] sm:$0xff] %vm1512, %v1455
        %1571 = vst [vmem:[%s203 + $0x1e0] sm:$0xff] %v1456
        %1572 = vst [vmem:[%s203 + $0x1e8] sm:$0xff] %v1457
        %1573 = vst.msk [vmem:[%s203 + $0x1f0] sm:$0xff] %vm1512, %v1458
        %1574 = vst [vmem:[%s203 + $0x1f8] sm:$0xff] %v1459
        %1575 = vst [vmem:[%s203 + $0x200] sm:$0xff] %v1460
        %1576 = vst.msk [vmem:[%s203 + $0x208] sm:$0xff] %vm1512, %v1461
        %1577 = vst [vmem:[%s203 + $0x210] sm:$0xff] %v1462
        %1578 = vst [vmem:[%s203 + $0x218] sm:$0xff] %v1463
        %1579 = vst.msk [vmem:[%s203 + $0x220] sm:$0xff] %vm1512, %v1464
        %1580 = vst [vmem:[%s203 + $0x228] sm:$0xff] %v1465
        %1581 = vst [vmem:[%s203 + $0x230] sm:$0xff] %v1466
        %1582 = vst.msk [vmem:[%s203 + $0x238] sm:$0xff] %vm1512, %v1467
        %1583 = vst [vmem:[%s203 + $0x240] sm:$0xff] %v1468
        %1584 = vst [vmem:[%s203 + $0x248] sm:$0xff] %v1469
        %1585 = vst.msk [vmem:[%s203 + $0x250] sm:$0xff] %vm1512, %v1470
        %1586 = vst [vmem:[%s203 + $0x258] sm:$0xff] %v1471
        %1587 = vst [vmem:[%s203 + $0x260] sm:$0xff] %v1472
        %1588 = vst.msk [vmem:[%s203 + $0x268] sm:$0xff] %vm1512, %v1473
        %1589 = vst [vmem:[%s203 + $0x270] sm:$0xff] %v1474
        %1590 = vst [vmem:[%s203 + $0x278] sm:$0xff] %v1475
        %1591 = vst.msk [vmem:[%s203 + $0x280] sm:$0xff] %vm1512, %v1476
        %1592 = vst [vmem:[%s203 + $0x288] sm:$0xff] %v1477
        %1593 = vst [vmem:[%s203 + $0x290] sm:$0xff] %v1478
        %1594 = vst.msk [vmem:[%s203 + $0x298] sm:$0xff] %vm1512, %v1479
        %1595 = vst [vmem:[%s203 + $0x2a0] sm:$0xff] %v1480
        %1596 = vst [vmem:[%s203 + $0x2a8] sm:$0xff] %v1481
        %1597 = vst.msk [vmem:[%s203 + $0x2b0] sm:$0xff] %vm1512, %v1482
        %1598 = vst [vmem:[%s203 + $0x2b8] sm:$0xff] %v1483
        %1599 = vst [vmem:[%s203 + $0x2c0] sm:$0xff] %v1484
        %1600 = vst.msk [vmem:[%s203 + $0x2c8] sm:$0xff] %vm1512, %v1485
        %1601 = vst [vmem:[%s203 + $0x2d0] sm:$0xff] %v1486
        %1602 = vst [vmem:[%s203 + $0x2d8] sm:$0xff] %v1487
        %1603 = vst.msk [vmem:[%s203 + $0x2e0] sm:$0xff] %vm1512, %v1488
        %1604 = vst [vmem:[%s203 + $0x2e8] sm:$0xff] %v1489
        %1605 = vst [vmem:[%s203 + $0x2f0] sm:$0xff] %v1490
        %1606 = vst.msk [vmem:[%s203 + $0x2f8] sm:$0xff] %vm1512, %v1491
        %1607 = vst [vmem:[%s203 + $0x300] sm:$0xff] %v1492
        %1608 = vst [vmem:[%s203 + $0x308] sm:$0xff] %v1493
        %1609 = vst.msk [vmem:[%s203 + $0x310] sm:$0xff] %vm1512, %v1494
        %1610 = vst [vmem:[%s203 + $0x318] sm:$0xff] %v1495
        %1611 = vst [vmem:[%s203 + $0x320] sm:$0xff] %v1496
        %1612 = vst.msk [vmem:[%s203 + $0x328] sm:$0xff] %vm1512, %v1497
        %1613 = vst [vmem:[%s203 + $0x330] sm:$0xff] %v1498
        %1614 = vst [vmem:[%s203 + $0x338] sm:$0xff] %v1499
        %1615 = vst.msk [vmem:[%s203 + $0x340] sm:$0xff] %vm1512, %v1500
        %1616 = vst [vmem:[%s203 + $0x348] sm:$0xff] %v1501
        %1617 = vst [vmem:[%s203 + $0x350] sm:$0xff] %v1502
        %1618 = vst.msk [vmem:[%s203 + $0x358] sm:$0xff] %vm1512, %v1503
        %1619 = vst [vmem:[%s203 + $0x360] sm:$0xff] %v1504
        %1620 = vst [vmem:[%s203 + $0x368] sm:$0xff] %v1505
        %1621 = vst.msk [vmem:[%s203 + $0x370] sm:$0xff] %vm1512, %v1506
        %1622 = vst [vmem:[%s203 + $0x378] sm:$0x7] %v1507
        %1623 = vst [vmem:[%s203 + $0x380] sm:$0x7] %v1508
        %vm1624 = vcmask 346112
        %1625 = vst.msk [vmem:[%s203 + $0x388] sm:$0x7] %vm1624, %v1509
        %s1626 = sand.u32 %s97, 1
        %s1627 = scalar_lea.sflag [#allocation4], %s1626
        %s1628 = sand.u32 %s97, 1
        %s1629 = smul.addr %s1628, 912
        %s1630 = scalar_lea.vmem [#allocation7], %s1629
        // Predicated region
        $region41: #{tpu_custom_call.1} parent=31 // pred_check
          %p1631 = pneg %p107
        $region42: #{tpu_custom_call.1} parent=31 // pred_check_branch
          %1633 = sbr.rel (%p1631) target = $region44
        $region43: #{tpu_custom_call.1} parent=31 // pred_region
          %s1635 = ssub.s32 14592, 14592
          %1636 = vsyncadd %s1627, %s1635
          %s1637 = smul.addr %s21, 114
          %s1638 = smul.addr %s1637, 128
          %s1639 = scalar_lea.hbm %s3, %s1638
          %s1640 = sshll.u32 %s1630, 4
          %s1641 = int_to_ptr.vmem [resolvable:$true] %s1640
          %1646 = dma.vmem_to_hbm [thread:$0]  %s1641, 14592, %s1639, %s1627, 384, 384, 24
        $region44: #{tpu_custom_call.1} parent=31 // pred_fallthru
          _
      $region32: #{tpu_custom_call.1} parent=5 // pred_fallthru
        _
      %p1647 = scmp.le.s32.totalorder 2, %s16
      // Predicated region
      $region45: #{tpu_custom_call.1} parent=5 // pred_check
        %p1648 = pneg %p1647
      $region46: #{tpu_custom_call.1} parent=5 // pred_check_branch
        %1650 = sbr.rel (%p1648) target = $region48
      $region47: #{tpu_custom_call.1} parent=5 // pred_region
        %s1651 = ssub.s32 %s16, 2
        // Predicated region
        $region49: #{tpu_custom_call.1} parent=47 // pred_check
          %p1652 = pneg %p113
        $region50: #{tpu_custom_call.1} parent=47 // pred_check_branch
          %1654 = sbr.rel (%p1652) target = $region52
        $region51: #{tpu_custom_call.1} parent=47 // pred_region
          %s1655 = sand.u32 %s98, 1
          %s1656 = scalar_lea.sflag [#allocation4], %s1655
          %s1657 = sand.u32 %s98, 1
          %s1658 = smul.addr %s1657, 912
          %s1659 = scalar_lea.vmem [#allocation7], %s1658
          %1660 = dma.done %s1656, 14592
        $region52: #{tpu_custom_call.1} parent=47 // pred_fallthru
          _
      $region48: #{tpu_custom_call.1} parent=5 // pred_fallthru
        _
    $region6: #{tpu_custom_call.1} parent=1 // loop_footer
      %s20 = sadd.s32 1, %s16
    $region7: #{tpu_custom_call.1} parent=1 // loop_footer_branch
      %15 = sbr.rel target = $region3
    $region8: #{tpu_custom_call.1} parent=1 // loop_exit
      _
    %1661 = vsyncpa [#allocation3], 1
    %s1662 = scalar_lea.sflag [#allocation3], 1
    %1663 = vsyncpa %s1662, 1
    %1664 = vsyncpa [#allocation6], 1
    %1665 = vsyncpa [#allocation4], 1
    %s1666 = scalar_lea.sflag [#allocation4], 1
    %1667 = vsyncpa %s1666, 1

</llo_original>
